<compile_context>
chip_gen: v6e
topology: v6e:2x2x1
jax: 0.10.0
libtpu: 0.0.40
codegen_flags: <defaults>
</compile_context>

<pallas_src>
import functools

import jax
import jax.numpy as jnp
from jax.experimental import pallas as pl
from jax.experimental.pallas import tpu as pltpu


# K-reduction tile target for the layer-1 (D_in) weight stream.  At the real
# D_in = 49152 scale the kernel is bound by streaming W1 from HBM, so the tile
# should be as large as the VMEM budget allows (measured Pallas data: 256-wide
# tile ~63% of HBM roofline, 1024-2048 ~85-94%).
TK_TARGET = 2048


def _round_up(x, m):
    return -(-x // m) * m


def _choose_tk(d_in):
    """Largest lane-multiple K tile <= TK_TARGET; D_in gets padded to a multiple."""
    if d_in >= TK_TARGET:
        return TK_TARGET
    return _round_up(d_in, 128)


# ----------------------------------------------------------------------------
# Kernel 1: both camera nets.  Grid = (net, K-tile); net axis is "parallel"
# (v7x: each TensorCore streams only its half of [W1_aux | W1_head]).
# ----------------------------------------------------------------------------
def cam_net_kernel(x_ref, w1_ref, b1_ref, w2_ref, b2_ref, w3_ref, b3_ref,
                   feat_ref, acc_ref):
    """One camera net (aux or head, chosen by grid axis 0) on its 2*RG rows.

    Layer 1 is K-tiled over grid axis 1 with an f32 accumulator scratch (bias
    folded into the init); layers 2/3 + ReLUs run in the k==last epilogue,
    entirely in VMEM.  bf16 MXU inputs, f32 accumulation / elementwise math.
    """
    k = pl.program_id(1)
    nk = pl.num_programs(1)

    @pl.when(k == 0)
    def _init():
        # Fold the layer-1 bias into the accumulator init.
        acc_ref[...] = jnp.broadcast_to(b1_ref[...], acc_ref.shape)

    acc_ref[...] += jnp.dot(x_ref[...], w1_ref[...],
                            preferred_element_type=jnp.float32)

    @pl.when(k == nk - 1)
    def _epilogue():
        h = jnp.maximum(acc_ref[...], 0.0).astype(jnp.bfloat16)     # ReLU in f32
        z = jnp.dot(h, w2_ref[0], preferred_element_type=jnp.float32) + b2_ref[0]
        z = jnp.maximum(z, 0.0).astype(jnp.bfloat16)
        z = jnp.dot(z, w3_ref[0], preferred_element_type=jnp.float32) + b3_ref[0]
        feat_ref[...] = jnp.maximum(z, 0.0)                          # (2RG, FEAT_pad) f32


# ----------------------------------------------------------------------------
# Kernel 2: cat_net head on the (4*RG, FEAT_pad) per-view features.
# ----------------------------------------------------------------------------
def cat_net_kernel(feat_ref, wc1_ref, bc1_ref, wc2_ref, bc2_ref, o_ref):
    """cat([aux, head, start_head, start_aux], 1) @ Wc1 expressed as a sum of
    four row-block matmuls (no in-kernel concatenate).  All slices land on
    whole 8-row sublane groups / 128-lane blocks; wc1 is sliced on the ref.
    Output is 128-lane padded so the final store is unmasked."""
    rg = feat_ref.shape[0] // 4          # per-view row group (multiple of 8)
    fp = feat_ref.shape[1]               # FEAT padded to 128 lanes

    fa = feat_ref[pl.ds(0 * rg, rg), :].astype(jnp.bfloat16)   # aux        (view 0)
    fsa = feat_ref[pl.ds(1 * rg, rg), :].astype(jnp.bfloat16)  # start_aux  (view 2)
    fh = feat_ref[pl.ds(2 * rg, rg), :].astype(jnp.bfloat16)   # head       (view 1)
    fsh = feat_ref[pl.ds(3 * rg, rg), :].astype(jnp.bfloat16)  # start_head (view 3)

    z = (jnp.dot(fa, wc1_ref[pl.ds(0 * fp, fp), :], preferred_element_type=jnp.float32)
         + jnp.dot(fh, wc1_ref[pl.ds(1 * fp, fp), :], preferred_element_type=jnp.float32)
         + jnp.dot(fsh, wc1_ref[pl.ds(2 * fp, fp), :], preferred_element_type=jnp.float32)
         + jnp.dot(fsa, wc1_ref[pl.ds(3 * fp, fp), :], preferred_element_type=jnp.float32)
         + bc1_ref[...])
    z = jnp.maximum(z, 0.0).astype(jnp.bfloat16)
    o_ref[...] = (jnp.dot(z, wc2_ref[...], preferred_element_type=jnp.float32)
                  + bc2_ref[...])


# ----------------------------------------------------------------------------
# pallas_call wrappers
# ----------------------------------------------------------------------------
def _vmem_limit_bytes(rows_per_net, tk, h1, h2, feat_pad):
    est = (2 * tk * h1 * 2                                     # W1 column-half tile, 2 buffers, bf16
           + 2 * rows_per_net * tk * 2                         # x tile, 2 buffers, bf16
           + rows_per_net * h1 * 4                             # f32 layer-1 accumulator
           + 2 * 2 * (h1 * h2 + h2 * feat_pad + h2 + feat_pad) * 2   # L2/L3 consts (2 bufs)
           + 2 * rows_per_net * feat_pad * 4)                  # output block
    # 2x headroom for compiler scratch; floor at the default scoped limit and
    # cap at 48 MiB so the budget is v7x-safe (64 MiB physical VMEM there).
    return int(min(max(2 * est + (8 << 20), 32 << 20), 48 << 20))


def _cam_net_forward(x_rows, kp, rows_per_net, tk):
    rows, d_in_pad = x_rows.shape
    assert d_in_pad % tk == 0 and rows == 2 * rows_per_net
    kt = d_in_pad // tk
    two_h1 = kp["w1"].shape[1]
    h1 = two_h1 // 2
    h2 = kp["w2"].shape[2]
    feat_pad = kp["w3"].shape[2]

    grid_spec = pltpu.PrefetchScalarGridSpec(
        num_scalar_prefetch=0,
        # Axis 0 splits the two camera nets (aux / head): independent row groups
        # and independent column halves of [W1_aux | W1_head] -> "parallel"
        # (v7x: each TensorCore streams only half of W1).  Axis 1 is the D_in
        # reduction -> "arbitrary", accumulator pattern.
        grid=(2, kt),
        in_specs=[
            pl.BlockSpec((rows_per_net, tk), lambda n, k: (n, k)),    # x (K-streamed)
            pl.BlockSpec((tk, h1), lambda n, k: (k, n)),              # W1 half (K-streamed)
            pl.BlockSpec((1, h1), lambda n, k: (0, n)),               # b1 half
            pl.BlockSpec((1, h1, h2), lambda n, k: (n, 0, 0)),        # L2 weight (const over k)
            pl.BlockSpec((1, 1, h2), lambda n, k: (n, 0, 0)),         # L2 bias
            pl.BlockSpec((1, h2, feat_pad), lambda n, k: (n, 0, 0)),  # L3 weight
            pl.BlockSpec((1, 1, feat_pad), lambda n, k: (n, 0, 0)),   # L3 bias
        ],
        out_specs=pl.BlockSpec((rows_per_net, feat_pad), lambda n, k: (n, 0)),
        scratch_shapes=[pltpu.VMEM((rows_per_net, h1), jnp.float32)],
    )
    return pl.pallas_call(
        cam_net_kernel,
        grid_spec=grid_spec,
        out_shape=jax.ShapeDtypeStruct((rows, feat_pad), jnp.float32),
        compiler_params=pltpu.CompilerParams(
            dimension_semantics=("parallel", "arbitrary"),
            vmem_limit_bytes=_vmem_limit_bytes(rows_per_net, tk, h1, h2, feat_pad)),
    )(x_rows, kp["w1"], kp["b1"], kp["w2"], kp["b2"], kp["w3"], kp["b3"])


def _cat_net_forward(feat, kp, rg):
    out_pad = kp["wc2"].shape[1]
    # Single invocation, everything resident in VMEM (a few hundred KiB).
    return pl.pallas_call(
        cat_net_kernel,
        out_shape=jax.ShapeDtypeStruct((rg, out_pad), jnp.float32),
    )(feat, kp["wc1"], kp["bc1"], kp["wc2"], kp["bc2"])


@functools.partial(jax.jit, static_argnames=("action_dim", "tk"))
def image_actor_forward(x, kp, action_dim, tk):
    B = x.shape[0]
    v = x.reshape(B, 4, -1).astype(jnp.float32)      # torch-style flatten(1) per view
    d_in = v.shape[-1]
    d_in_pad = _round_up(d_in, tk)                   # zero-pad K to a tk multiple
    rg = _round_up(max(B, 8), 8)                     # per-view row group, sublane aligned

    def view_rows(i):
        return jnp.pad(v[:, i], ((0, rg - B), (0, d_in_pad - d_in)))

    # Row layout: [aux(view0) | start_aux(view2) | head(view1) | start_head(view3)],
    # each padded to rg rows, so net 0 (aux) owns rows [0:2rg) and net 1 (head)
    # rows [2rg:4rg); every slice in both kernels is whole-8-row aligned.
    x_rows = jnp.concatenate([view_rows(0), view_rows(2), view_rows(1), view_rows(3)],
                             axis=0).astype(jnp.bfloat16)

    feat = _cam_net_forward(x_rows, kp, rows_per_net=2 * rg, tk=tk)
    out = _cat_net_forward(feat, kp, rg=rg)
    return out[:B, :action_dim]                      # drop row + lane padding


# ----------------------------------------------------------------------------
# Parameter construction (deterministic, in-script)
# ----------------------------------------------------------------------------
def make_linear_params(key, d_in, d_out):
    kw, kb = jax.random.split(key)
    bound = 1.0 / (d_in ** 0.5)           # same scale family as torch Linear init
    w = jax.random.uniform(kw, (d_in, d_out), jnp.float32, -bound, bound)
    b = jax.random.uniform(kb, (1, d_out), jnp.float32, -bound, bound)
    return w, b


def make_params(key, d_in, h1, h2, feat, cat_hidden, action_dim):
    ks = jax.random.split(key, 8)
    return {
        "aux": [make_linear_params(ks[0], d_in, h1),
                make_linear_params(ks[1], h1, h2),
                make_linear_params(ks[2], h2, feat)],
        "head": [make_linear_params(ks[3], d_in, h1),
                 make_linear_params(ks[4], h1, h2),
                 make_linear_params(ks[5], h2, feat)],
        "cat": [make_linear_params(ks[6], 4 * feat, cat_hidden),
                make_linear_params(ks[7], cat_hidden, action_dim)],
    }


def pack_kernel_params(params, tk, feat_pad=128, out_pad=128):
    """Kernel-ready params.

    * W1 of both nets concatenated column-wise -> (D_in_pad, 2*H1); D_in rows
      zero-padded to a tk multiple.
    * L2/L3 weights/biases stacked on a leading net axis (7 kernel operands
      instead of 16).
    * FEAT and action_dim lane-padded to 128 with zeros on BOTH sides (w3/b3
      output columns AND wc1 input rows) so padding never contaminates results
      and all stores are lane-dense/unmasked.
    """
    (w1a, b1a), (w2a, b2a), (w3a, b3a) = params["aux"]
    (w1h, b1h), (w2h, b2h), (w3h, b3h) = params["head"]
    (wc1, bc1), (wc2, bc2) = params["cat"]
    bf = jnp.bfloat16
    d_in = w1a.shape[0]
    feat = w3a.shape[1]
    pk = _round_up(d_in, tk) - d_in
    pf = feat_pad - feat
    po = out_pad - wc2.shape[1]

    # cat_net layer-1 rows grouped per cat input [aux | head | start_head |
    # start_aux], each group zero-padded from feat -> feat_pad rows.
    wc1_groups = [jnp.pad(wc1[g * feat:(g + 1) * feat], ((0, pf), (0, 0)))
                  for g in range(4)]

    return {
        "w1": jnp.concatenate([jnp.pad(w1a, ((0, pk), (0, 0))),
                               jnp.pad(w1h, ((0, pk), (0, 0)))], axis=1).astype(bf),
        "b1": jnp.concatenate([b1a, b1h], axis=1),
        "w2": jnp.stack([w2a, w2h]).astype(bf),
        "b2": jnp.stack([b2a, b2h]),
        "w3": jnp.stack([jnp.pad(w3a, ((0, 0), (0, pf))),
                         jnp.pad(w3h, ((0, 0), (0, pf)))]).astype(bf),
        "b3": jnp.stack([jnp.pad(b3a, ((0, 0), (0, pf))),
                         jnp.pad(b3h, ((0, 0), (0, pf)))]),
        "wc1": jnp.concatenate(wc1_groups, axis=0).astype(bf),   # (4*feat_pad, cat_hidden)
        "bc1": bc1,
        "wc2": jnp.pad(wc2, ((0, 0), (0, po))).astype(bf),       # zero-pad to 128 lanes
        "bc2": jnp.pad(bc2, ((0, 0), (0, po))),
    }


# ----------------------------------------------------------------------------
# Pure-JAX reference (same bf16-in / f32-accumulate numerics)
# ----------------------------------------------------------------------------
def reference_forward(x, params):
    B = x.shape[0]
    bf = jnp.bfloat16
    v = x.reshape(B, 4, -1).astype(jnp.float32)

    def cam(img, p):
        (w1, b1), (w2, b2), (w3, b3) = p
        h = jnp.maximum(jnp.dot(img.astype(bf), w1.astype(bf),
                                preferred_element_type=jnp.float32) + b1, 0.0)
        h = jnp.maximum(jnp.dot(h.astype(bf), w2.astype(bf),
                                preferred_element_type=jnp.float32) + b2, 0.0)
        return jnp.maximum(jnp.dot(h.astype(bf), w3.astype(bf),
                                   preferred_element_type=jnp.float32) + b3, 0.0)

    a = cam(v[:, 0], params["aux"])
    h_ = cam(v[:, 1], params["head"])
    sa = cam(v[:, 2], params["aux"])
    sh = cam(v[:, 3], params["head"])
    cat = jnp.concatenate([a, h_, sh, sa], axis=1)
    (wc1, bc1), (wc2, bc2) = params["cat"]
    z = jnp.maximum(jnp.dot(cat.astype(bf), wc1.astype(bf),
                            preferred_element_type=jnp.float32) + bc1, 0.0)
    return jnp.dot(z.astype(bf), wc2.astype(bf),
                   preferred_element_type=jnp.float32) + bc2


if __name__ == "__main__":
    # Small shapes consistent with the module: 4 camera views of CxHxW images.
    B, C, H, W = 2, 3, 16, 16
    D_IN = C * H * W                       # 768   (stands in for 49152 = 3*128*128)
    H1, H2, FEAT = 128, 128, 32            # lane-friendly stand-ins
    CAT_HIDDEN, ACTION_DIM = 128, 8        # stand in for 50 / action_dim

    # Toy-scale K tile so the test exercises a multi-step (kt=3) reduction grid;
    # at the real D_in=49152 scale use _choose_tk(D_IN) -> TK_TARGET=2048.
    TK = 256

    key = jax.random.PRNGKey(0)
    k_x, k_p = jax.random.split(key)
    x = jax.random.normal(k_x, (B, 4, C, H, W), dtype=jnp.float32)
    params = make_params(k_p, D_IN, H1, H2, FEAT, CAT_HIDDEN, ACTION_DIM)
    kp = pack_kernel_params(params, tk=TK)

    out = image_actor_forward(x, kp, action_dim=ACTION_DIM, tk=TK)
    jax.block_until_ready(out)
    assert out.shape == (B, ACTION_DIM), out.shape

    ref = reference_forward(x, params)
    assert jnp.allclose(out, ref, rtol=5e-2, atol=5e-2), "mismatch vs reference"
    print("KERNEL_OK")
</pallas_src>

<mosaic_0001>
module attributes {stable_mosaic.version = 11 : i64} {
  func.func @cat_net_kernel(%arg0: memref<32x128xf32, #tpu.memory_space<vmem>>, %arg1: memref<512x128xbf16, #tpu.memory_space<vmem>>, %arg2: memref<1x128xf32, #tpu.memory_space<vmem>>, %arg3: memref<128x128xbf16, #tpu.memory_space<vmem>>, %arg4: memref<1x128xf32, #tpu.memory_space<vmem>>, %arg5: memref<8x128xf32, #tpu.memory_space<vmem>>) attributes {dimension_semantics = [], scalar_prefetch = 0 : i64, scratch_operands = 0 : i64, tpu.core_type = #tpu.core_type<tc>} {
    %c0 = arith.constant 0 : index
    %c0_0 = arith.constant 0 : index
    %0 = vector.load %arg0[%c0, %c0_0] : memref<32x128xf32, #tpu.memory_space<vmem>>, vector<8x128xf32>
    %1 = arith.truncf %0 : vector<8x128xf32> to vector<8x128xbf16>
    %c8 = arith.constant 8 : index
    %c0_1 = arith.constant 0 : index
    %2 = vector.load %arg0[%c8, %c0_1] : memref<32x128xf32, #tpu.memory_space<vmem>>, vector<8x128xf32>
    %3 = arith.truncf %2 : vector<8x128xf32> to vector<8x128xbf16>
    %c16 = arith.constant 16 : index
    %c0_2 = arith.constant 0 : index
    %4 = vector.load %arg0[%c16, %c0_2] : memref<32x128xf32, #tpu.memory_space<vmem>>, vector<8x128xf32>
    %5 = arith.truncf %4 : vector<8x128xf32> to vector<8x128xbf16>
    %c24 = arith.constant 24 : index
    %c0_3 = arith.constant 0 : index
    %6 = vector.load %arg0[%c24, %c0_3] : memref<32x128xf32, #tpu.memory_space<vmem>>, vector<8x128xf32>
    %7 = arith.truncf %6 : vector<8x128xf32> to vector<8x128xbf16>
    %c0_4 = arith.constant 0 : index
    %c0_5 = arith.constant 0 : index
    %8 = vector.load %arg1[%c0_4, %c0_5] : memref<512x128xbf16, #tpu.memory_space<vmem>>, vector<128x128xbf16>
    %cst = arith.constant dense<0.000000e+00> : vector<8x128xf32>
    %9 = tpu.matmul %1, %8, %cst {dimension_numbers = #tpu.dot_dimension_numbers<[1], [0], [0], [1], [0, 0, 1, 1], [], []>} : vector<8x128xbf16>, vector<128x128xbf16>, vector<8x128xf32> -> vector<8x128xf32>
    %c128 = arith.constant 128 : index
    %c0_6 = arith.constant 0 : index
    %10 = vector.load %arg1[%c128, %c0_6] : memref<512x128xbf16, #tpu.memory_space<vmem>>, vector<128x128xbf16>
    %cst_7 = arith.constant dense<0.000000e+00> : vector<8x128xf32>
    %11 = tpu.matmul %5, %10, %cst_7 {dimension_numbers = #tpu.dot_dimension_numbers<[1], [0], [0], [1], [0, 0, 1, 1], [], []>} : vector<8x128xbf16>, vector<128x128xbf16>, vector<8x128xf32> -> vector<8x128xf32>
    %12 = arith.addf %9, %11 : vector<8x128xf32>
    %c256 = arith.constant 256 : index
    %c0_8 = arith.constant 0 : index
    %13 = vector.load %arg1[%c256, %c0_8] : memref<512x128xbf16, #tpu.memory_space<vmem>>, vector<128x128xbf16>
    %cst_9 = arith.constant dense<0.000000e+00> : vector<8x128xf32>
    %14 = tpu.matmul %7, %13, %cst_9 {dimension_numbers = #tpu.dot_dimension_numbers<[1], [0], [0], [1], [0, 0, 1, 1], [], []>} : vector<8x128xbf16>, vector<128x128xbf16>, vector<8x128xf32> -> vector<8x128xf32>
    %15 = arith.addf %12, %14 : vector<8x128xf32>
    %c384 = arith.constant 384 : index
    %c0_10 = arith.constant 0 : index
    %16 = vector.load %arg1[%c384, %c0_10] : memref<512x128xbf16, #tpu.memory_space<vmem>>, vector<128x128xbf16>
    %cst_11 = arith.constant dense<0.000000e+00> : vector<8x128xf32>
    %17 = tpu.matmul %3, %16, %cst_11 {dimension_numbers = #tpu.dot_dimension_numbers<[1], [0], [0], [1], [0, 0, 1, 1], [], []>} : vector<8x128xbf16>, vector<128x128xbf16>, vector<8x128xf32> -> vector<8x128xf32>
    %18 = arith.addf %15, %17 : vector<8x128xf32>
    %c0_12 = arith.constant 0 : index
    %c0_13 = arith.constant 0 : index
    %19 = vector.load %arg2[%c0_12, %c0_13] : memref<1x128xf32, #tpu.memory_space<vmem>>, vector<1x128xf32>
    %20 = vector.broadcast %19 : vector<1x128xf32> to vector<8x128xf32>
    %21 = arith.addf %18, %20 : vector<8x128xf32>
    %cst_14 = arith.constant 0.000000e+00 : f32
    %22 = vector.broadcast %cst_14 : f32 to vector<8x128xf32>
    %23 = arith.maximumf %21, %22 : vector<8x128xf32>
    %24 = arith.truncf %23 : vector<8x128xf32> to vector<8x128xbf16>
    %c0_15 = arith.constant 0 : index
    %c0_16 = arith.constant 0 : index
    %25 = vector.load %arg3[%c0_15, %c0_16] : memref<128x128xbf16, #tpu.memory_space<vmem>>, vector<128x128xbf16>
    %cst_17 = arith.constant dense<0.000000e+00> : vector<8x128xf32>
    %26 = tpu.matmul %24, %25, %cst_17 {dimension_numbers = #tpu.dot_dimension_numbers<[1], [0], [0], [1], [0, 0, 1, 1], [], []>} : vector<8x128xbf16>, vector<128x128xbf16>, vector<8x128xf32> -> vector<8x128xf32>
    %c0_18 = arith.constant 0 : index
    %c0_19 = arith.constant 0 : index
    %27 = vector.load %arg4[%c0_18, %c0_19] : memref<1x128xf32, #tpu.memory_space<vmem>>, vector<1x128xf32>
    %28 = vector.broadcast %27 : vector<1x128xf32> to vector<8x128xf32>
    %29 = arith.addf %26, %28 : vector<8x128xf32>
    %c0_20 = arith.constant 0 : index
    %c0_21 = arith.constant 0 : index
    %30 = vector.load %arg5[%c0_20, %c0_21] : memref<8x128xf32, #tpu.memory_space<vmem>>, vector<8x128xf32>
    tpu.vector_store %arg5[%c0_20, %c0_21], %29 {strides = array<i32>} : memref<8x128xf32, #tpu.memory_space<vmem>>, vector<8x128xf32>,
    return
  }
}

module attributes {stable_mosaic.version = 11 : i64} {
  func.func @cam_net_kernel(%arg0: i32, %arg1: i32, %arg2: memref<16x256xbf16, #tpu.memory_space<vmem>>, %arg3: memref<256x128xbf16, #tpu.memory_space<vmem>>, %arg4: memref<1x128xf32, #tpu.memory_space<vmem>>, %arg5: memref<1x128x128xbf16, #tpu.memory_space<vmem>>, %arg6: memref<1x1x128xf32, #tpu.memory_space<vmem>>, %arg7: memref<1x128x128xbf16, #tpu.memory_space<vmem>>, %arg8: memref<1x1x128xf32, #tpu.memory_space<vmem>>, %arg9: memref<16x128xf32, #tpu.memory_space<vmem>>, %arg10: memref<16x128xf32, #tpu.memory_space<vmem>>) attributes {dimension_semantics = [#tpu.dimension_semantics<parallel>, #tpu.dimension_semantics<arbitrary>], iteration_bounds = array<i64: 2, 3>, scalar_prefetch = 0 : i64, scratch_operands = 1 : i64, tpu.core_type = #tpu.core_type<tc>, window_params = [{transform_indices = @transform_0, window_bounds = array<i64: 16, 256>}, {transform_indices = @transform_1, window_bounds = array<i64: 256, 128>}, {transform_indices = @transform_2, window_bounds = array<i64: 1, 128>}, {transform_indices = @transform_3, window_bounds = array<i64: 1, 128, 128>}, {transform_indices = @transform_4, window_bounds = array<i64: 1, 1, 128>}, {transform_indices = @transform_5, window_bounds = array<i64: 1, 128, 128>}, {transform_indices = @transform_6, window_bounds = array<i64: 1, 1, 128>}, {transform_indices = @transform_7, window_bounds = array<i64: 16, 128>}]} {
    %c0_i32 = arith.constant 0 : i32
    %0 = arith.cmpi eq, %arg1, %c0_i32 : i32
    %1 = arith.extui %0 : i1 to i32
    %c0_i32_0 = arith.constant 0 : i32
    %2 = arith.cmpi ne, %1, %c0_i32_0 : i32
    scf.if %2 {
      %c0_9 = arith.constant 0 : index
      %c0_10 = arith.constant 0 : index
      %12 = vector.load %arg4[%c0_9, %c0_10] : memref<1x128xf32, #tpu.memory_space<vmem>>, vector<1x128xf32>
      %13 = vector.shape_cast %12 : vector<1x128xf32> to vector<1x128xf32>
      %14 = vector.broadcast %13 : vector<1x128xf32> to vector<16x128xf32>
      %c0_11 = arith.constant 0 : index
      %c0_12 = arith.constant 0 : index
      %15 = vector.load %arg10[%c0_11, %c0_12] : memref<16x128xf32, #tpu.memory_space<vmem>>, vector<16x128xf32>
      tpu.vector_store %arg10[%c0_11, %c0_12], %14 {strides = array<i32>} : memref<16x128xf32, #tpu.memory_space<vmem>>, vector<16x128xf32>,
    } else {
    }
    %c0 = arith.constant 0 : index
    %c0_1 = arith.constant 0 : index
    %3 = vector.load %arg10[%c0, %c0_1] : memref<16x128xf32, #tpu.memory_space<vmem>>, vector<16x128xf32>
    %c0_2 = arith.constant 0 : index
    %c0_3 = arith.constant 0 : index
    %4 = vector.load %arg2[%c0_2, %c0_3] : memref<16x256xbf16, #tpu.memory_space<vmem>>, vector<16x256xbf16>
    %c0_4 = arith.constant 0 : index
    %c0_5 = arith.constant 0 : index
    %5 = vector.load %arg3[%c0_4, %c0_5] : memref<256x128xbf16, #tpu.memory_space<vmem>>, vector<256x128xbf16>
    %cst = arith.constant dense<0.000000e+00> : vector<16x128xf32>
    %6 = tpu.matmul %4, %5, %cst {dimension_numbers = #tpu.dot_dimension_numbers<[1], [0], [0], [1], [0, 0, 1, 1], [], []>} : vector<16x256xbf16>, vector<256x128xbf16>, vector<16x128xf32> -> vector<16x128xf32>
    %7 = arith.addf %3, %6 : vector<16x128xf32>
    %c0_6 = arith.constant 0 : index
    %c0_7 = arith.constant 0 : index
    %8 = vector.load %arg10[%c0_6, %c0_7] : memref<16x128xf32, #tpu.memory_space<vmem>>, vector<16x128xf32>
    tpu.vector_store %arg10[%c0_6, %c0_7], %7 {strides = array<i32>} : memref<16x128xf32, #tpu.memory_space<vmem>>, vector<16x128xf32>,
    %c2_i32 = arith.constant 2 : i32
    %9 = arith.cmpi eq, %arg1, %c2_i32 : i32
    %10 = arith.extui %9 : i1 to i32
    %c0_i32_8 = arith.constant 0 : i32
    %11 = arith.cmpi ne, %10, %c0_i32_8 : i32
    scf.if %11 {
      %c0_9 = arith.constant 0 : index
      %c0_10 = arith.constant 0 : index
      %12 = vector.load %arg10[%c0_9, %c0_10] : memref<16x128xf32, #tpu.memory_space<vmem>>, vector<16x128xf32>
      %cst_11 = arith.constant 0.000000e+00 : f32
      %13 = vector.broadcast %cst_11 : f32 to vector<16x128xf32>
      %14 = arith.maximumf %12, %13 : vector<16x128xf32>
      %15 = arith.truncf %14 : vector<16x128xf32> to vector<16x128xbf16>
      %c0_12 = arith.constant 0 : index
      %c0_13 = arith.constant 0 : index
      %c0_14 = arith.constant 0 : index
      %16 = vector.load %arg5[%c0_12, %c0_13, %c0_14] : memref<1x128x128xbf16, #tpu.memory_space<vmem>>, vector<1x128x128xbf16>
      %17 = vector.shape_cast %16 : vector<1x128x128xbf16> to vector<128x128xbf16>
      %cst_15 = arith.constant dense<0.000000e+00> : vector<16x128xf32>
      %18 = tpu.matmul %15, %17, %cst_15 {dimension_numbers = #tpu.dot_dimension_numbers<[1], [0], [0], [1], [0, 0, 1, 1], [], []>} : vector<16x128xbf16>, vector<128x128xbf16>, vector<16x128xf32> -> vector<16x128xf32>
      %c0_16 = arith.constant 0 : index
      %c0_17 = arith.constant 0 : index
      %c0_18 = arith.constant 0 : index
      %19 = vector.load %arg6[%c0_16, %c0_17, %c0_18] : memref<1x1x128xf32, #tpu.memory_space<vmem>>, vector<1x1x128xf32>
      %20 = vector.shape_cast %19 : vector<1x1x128xf32> to vector<1x128xf32>
      %21 = vector.broadcast %20 : vector<1x128xf32> to vector<16x128xf32>
      %22 = arith.addf %18, %21 : vector<16x128xf32>
      %cst_19 = arith.constant 0.000000e+00 : f32
      %23 = vector.broadcast %cst_19 : f32 to vector<16x128xf32>
      %24 = arith.maximumf %22, %23 : vector<16x128xf32>
      %25 = arith.truncf %24 : vector<16x128xf32> to vector<16x128xbf16>
      %c0_20 = arith.constant 0 : index
      %c0_21 = arith.constant 0 : index
      %c0_22 = arith.constant 0 : index
      %26 = vector.load %arg7[%c0_20, %c0_21, %c0_22] : memref<1x128x128xbf16, #tpu.memory_space<vmem>>, vector<1x128x128xbf16>
      %27 = vector.shape_cast %26 : vector<1x128x128xbf16> to vector<128x128xbf16>
      %cst_23 = arith.constant dense<0.000000e+00> : vector<16x128xf32>
      %28 = tpu.matmul %25, %27, %cst_23 {dimension_numbers = #tpu.dot_dimension_numbers<[1], [0], [0], [1], [0, 0, 1, 1], [], []>} : vector<16x128xbf16>, vector<128x128xbf16>, vector<16x128xf32> -> vector<16x128xf32>
      %c0_24 = arith.constant 0 : index
      %c0_25 = arith.constant 0 : index
      %c0_26 = arith.constant 0 : index
      %29 = vector.load %arg8[%c0_24, %c0_25, %c0_26] : memref<1x1x128xf32, #tpu.memory_space<vmem>>, vector<1x1x128xf32>
      %30 = vector.shape_cast %29 : vector<1x1x128xf32> to vector<1x128xf32>
      %31 = vector.broadcast %30 : vector<1x128xf32> to vector<16x128xf32>
      %32 = arith.addf %28, %31 : vector<16x128xf32>
      %cst_27 = arith.constant 0.000000e+00 : f32
      %33 = vector.broadcast %cst_27 : f32 to vector<16x128xf32>
      %34 = arith.maximumf %32, %33 : vector<16x128xf32>
      %c0_28 = arith.constant 0 : index
      %c0_29 = arith.constant 0 : index
      %35 = vector.load %arg9[%c0_28, %c0_29] : memref<16x128xf32, #tpu.memory_space<vmem>>, vector<16x128xf32>
      tpu.vector_store %arg9[%c0_28, %c0_29], %34 {strides = array<i32>} : memref<16x128xf32, #tpu.memory_space<vmem>>, vector<16x128xf32>,
    } else {
    }
    return
  }
  func.func @transform_0(%arg0: i32, %arg1: i32) -> (i32, i32) {
    %c0_i32 = arith.constant 0 : i32
    return %arg0, %arg1 : i32, i32
  }
  func.func @transform_1(%arg0: i32, %arg1: i32) -> (i32, i32) {
    %c0_i32 = arith.constant 0 : i32
    return %arg1, %arg0 : i32, i32
  }
  func.func @transform_2(%arg0: i32, %arg1: i32) -> (i32, i32) {
    %c0_i32 = arith.constant 0 : i32
    %c0_i32_0 = arith.constant 0 : i32
    return %c0_i32, %arg0 : i32, i32
  }
  func.func @transform_3(%arg0: i32, %arg1: i32) -> (i32, i32, i32) {
    %c0_i32 = arith.constant 0 : i32
    %c0_i32_0 = arith.constant 0 : i32
    %c0_i32_1 = arith.constant 0 : i32
    return %arg0, %c0_i32, %c0_i32_0 : i32, i32, i32
  }
  func.func @transform_4(%arg0: i32, %arg1: i32) -> (i32, i32, i32) {
    %c0_i32 = arith.constant 0 : i32
    %c0_i32_0 = arith.constant 0 : i32
    %c0_i32_1 = arith.constant 0 : i32
    return %arg0, %c0_i32, %c0_i32_0 : i32, i32, i32
  }
  func.func @transform_5(%arg0: i32, %arg1: i32) -> (i32, i32, i32) {
    %c0_i32 = arith.constant 0 : i32
    %c0_i32_0 = arith.constant 0 : i32
    %c0_i32_1 = arith.constant 0 : i32
    return %arg0, %c0_i32, %c0_i32_0 : i32, i32, i32
  }
  func.func @transform_6(%arg0: i32, %arg1: i32) -> (i32, i32, i32) {
    %c0_i32 = arith.constant 0 : i32
    %c0_i32_0 = arith.constant 0 : i32
    %c0_i32_1 = arith.constant 0 : i32
    return %arg0, %c0_i32, %c0_i32_0 : i32, i32, i32
  }
  func.func @transform_7(%arg0: i32, %arg1: i32) -> (i32, i32) {
    %c0_i32 = arith.constant 0 : i32
    %c0_i32_0 = arith.constant 0 : i32
    return %arg0, %c0_i32 : i32, i32
  }
}

</mosaic_0001>

<llo_original>
// kernel: image_actor_forward.3
$region0: #{image_actor_forward.3}
  #allocation0 [shape = 'u32[]', space=smem, size = 0x4, offset = 0x4, fixed_abs, tag = 'smem constant byte address 0x4 - core index']
  #allocation1 [shape = 'u32[144,128]{1,0:T(1,128)}', space=vmem, size = 0x12000, scoped, tag = 'internal scratch']
  %s0 = inlined_call_operand.vmem [shape: f32[32,128], index: 0, kind: input, shape index: {}]
  %s1 = inlined_call_operand.vmem [shape: bf16[512,128], index: 1, kind: input, shape index: {}]
  %s2 = inlined_call_operand.vmem [shape: f32[1,128], index: 2, kind: input, shape index: {}]
  %s3 = inlined_call_operand.vmem [shape: bf16[128,128], index: 3, kind: input, shape index: {}]
  %s4 = inlined_call_operand.vmem [shape: f32[1,128], index: 4, kind: input, shape index: {}]
  %s5 = inlined_call_operand.vmem [shape: f32[8,128], index: 5, kind: output, shape index: {}]
  %s6 = sld [smem:[#allocation0]]
  $region30: #{image_actor_forward.3} parent=0
    _
  %s8 = ssub.s32 1, %s6
  %s9 = scalar_select 0, %s8, %s6
  // Predicated region
  $region2: #{image_actor_forward.3} parent=0 // pred_check
    _
  $region3: #{image_actor_forward.3} parent=0 // pred_check_branch
    %11 = sbr.rel (0) target = $region5
  $region4: #{image_actor_forward.3} parent=0 // pred_region
    _
  $region5: #{image_actor_forward.3} parent=0 // pred_fallthru
    _
  // Predicated region
  $region6: #{image_actor_forward.3} parent=0 // pred_check
    _
  $region7: #{image_actor_forward.3} parent=0 // pred_check_branch
    %13 = sbr.rel (0) target = $region9
  $region8: #{image_actor_forward.3} parent=0 // pred_region
    _
  $region9: #{image_actor_forward.3} parent=0 // pred_fallthru
    _
  // Predicated region
  $region10: #{image_actor_forward.3} parent=0 // pred_check
    _
  $region11: #{image_actor_forward.3} parent=0 // pred_check_branch
    %15 = sbr.rel (0) target = $region13
  $region12: #{image_actor_forward.3} parent=0 // pred_region
    _
  $region13: #{image_actor_forward.3} parent=0 // pred_fallthru
    _
  // Predicated region
  $region14: #{image_actor_forward.3} parent=0 // pred_check
    _
  $region15: #{image_actor_forward.3} parent=0 // pred_check_branch
    %17 = sbr.rel (0) target = $region17
  $region16: #{image_actor_forward.3} parent=0 // pred_region
    _
  $region17: #{image_actor_forward.3} parent=0 // pred_fallthru
    _
  // Predicated region
  $region18: #{image_actor_forward.3} parent=0 // pred_check
    _
  $region19: #{image_actor_forward.3} parent=0 // pred_check_branch
    %19 = sbr.rel (0) target = $region21
  $region20: #{image_actor_forward.3} parent=0 // pred_region
    _
  $region21: #{image_actor_forward.3} parent=0 // pred_fallthru
    _
  %v21 = vld [vmem:[%s0] sm:$0xff]
  %v22 = vpack.c.bf16 %v21, %v21
  %v23 = vld [vmem:[%s0 + $0x8] sm:$0xff]
  %v24 = vpack.c.bf16 %v23, %v23
  %v25 = vld [vmem:[%s0 + $0x10] sm:$0xff]
  %v26 = vpack.c.bf16 %v25, %v25
  %v27 = vld [vmem:[%s0 + $0x18] sm:$0xff]
  %v28 = vpack.c.bf16 %v27, %v27
  %v29 = vld [vmem:[%s1] sm:$0xf]
  %v30 = vld [vmem:[%s1 + $0x4] sm:$0xf]
  %v31 = vld [vmem:[%s1 + $0x8] sm:$0xf]
  %v32 = vld [vmem:[%s1 + $0xc] sm:$0xf]
  %v33 = vld [vmem:[%s1 + $0x10] sm:$0xf]
  %v34 = vld [vmem:[%s1 + $0x14] sm:$0xf]
  %v35 = vld [vmem:[%s1 + $0x18] sm:$0xf]
  %v36 = vld [vmem:[%s1 + $0x1c] sm:$0xf]
  %v37 = vld [vmem:[%s1 + $0x20] sm:$0xf]
  %v38 = vld [vmem:[%s1 + $0x24] sm:$0xf]
  %v39 = vld [vmem:[%s1 + $0x28] sm:$0xf]
  %v40 = vld [vmem:[%s1 + $0x2c] sm:$0xf]
  %v41 = vld [vmem:[%s1 + $0x30] sm:$0xf]
  %v42 = vld [vmem:[%s1 + $0x34] sm:$0xf]
  %v43 = vld [vmem:[%s1 + $0x38] sm:$0xf]
  %v44 = vld [vmem:[%s1 + $0x3c] sm:$0xf]
  %v45 = vld [vmem:[%s1 + $0x40] sm:$0xf]
  %v46 = vld [vmem:[%s1 + $0x44] sm:$0xf]
  %v47 = vld [vmem:[%s1 + $0x48] sm:$0xf]
  %v48 = vld [vmem:[%s1 + $0x4c] sm:$0xf]
  %v49 = vld [vmem:[%s1 + $0x50] sm:$0xf]
  %v50 = vld [vmem:[%s1 + $0x54] sm:$0xf]
  %v51 = vld [vmem:[%s1 + $0x58] sm:$0xf]
  %v52 = vld [vmem:[%s1 + $0x5c] sm:$0xf]
  %v53 = vld [vmem:[%s1 + $0x60] sm:$0xf]
  %v54 = vld [vmem:[%s1 + $0x64] sm:$0xf]
  %v55 = vld [vmem:[%s1 + $0x68] sm:$0xf]
  %v56 = vld [vmem:[%s1 + $0x6c] sm:$0xf]
  %v57 = vld [vmem:[%s1 + $0x70] sm:$0xf]
  %v58 = vld [vmem:[%s1 + $0x74] sm:$0xf]
  %v59 = vld [vmem:[%s1 + $0x78] sm:$0xf]
  %v60 = vld [vmem:[%s1 + $0x7c] sm:$0xf]
  %v77 = vunpack.c.l.b16 %v45
  %v78 = vunpack.c.l.b16 %v46
  %v79 = vunpack.c.l.b16 %v47
  %v80 = vunpack.c.l.b16 %v48
  %v81 = vunpack.c.l.b16 %v49
  %v82 = vunpack.c.l.b16 %v50
  %v83 = vunpack.c.l.b16 %v51
  %v84 = vunpack.c.l.b16 %v52
  %v85 = vunpack.c.l.b16 %v53
  %v86 = vunpack.c.l.b16 %v54
  %v87 = vunpack.c.l.b16 %v55
  %v88 = vunpack.c.l.b16 %v56
  %v89 = vunpack.c.l.b16 %v57
  %v90 = vunpack.c.l.b16 %v58
  %v91 = vunpack.c.l.b16 %v59
  %v92 = vunpack.c.l.b16 %v60
  %v93 = vpack.c.b16 %v78, %v77
  %v94 = vpack.c.b16 %v80, %v79
  %v95 = vpack.c.b16 %v82, %v81
  %v96 = vpack.c.b16 %v84, %v83
  %v97 = vpack.c.b16 %v86, %v85
  %v98 = vpack.c.b16 %v88, %v87
  %v99 = vpack.c.b16 %v90, %v89
  %v100 = vpack.c.b16 %v92, %v91
  %109 = vmatprep.subr.bf16.mxu0 0
  %110 = vmatpush1.bf16.msra.mxu0 %v100
  %111 = vmatprep.subr.bf16.mxu0 0
  %112 = vmatpush1.bf16.msra.mxu0 %v99
  %113 = vmatprep.subr.bf16.mxu0 0
  %114 = vmatpush1.bf16.msra.mxu0 %v98
  %115 = vmatprep.subr.bf16.mxu0 0
  %116 = vmatpush1.bf16.msra.mxu0 %v97
  %117 = vmatprep.subr.bf16.mxu0 0
  %118 = vmatpush1.bf16.msra.mxu0 %v96
  %119 = vmatprep.subr.bf16.mxu0 0
  %120 = vmatpush1.bf16.msra.mxu0 %v95
  %121 = vmatprep.subr.bf16.mxu0 0
  %122 = vmatpush1.bf16.msra.mxu0 %v94
  %123 = vmatprep.subr.bf16.mxu0 0
  %124 = vmatpush1.bf16.msra.mxu0 %v93
  %125 = vmatprep.subr.bf16.mxu0 0
  %126 = vmatpush2.bf16.msra.mxu0 0
  %127 = vmatprep.subr.bf16.mxu0 0
  %128 = vmatpush2.bf16.msra.mxu0 0
  %129 = vmatprep.subr.bf16.mxu0 0
  %130 = vmatpush2.bf16.msra.mxu0 0
  %131 = vmatprep.subr.bf16.mxu0 0
  %132 = vmatpush2.bf16.msra.mxu0 0
  %133 = vmatprep.subr.bf16.mxu0 0
  %134 = vmatpush2.bf16.msra.mxu0 0
  %135 = vmatprep.subr.bf16.mxu0 0
  %136 = vmatpush2.bf16.msra.mxu0 0
  %137 = vmatprep.subr.bf16.mxu0 0
  %138 = vmatpush2.bf16.msra.mxu0 0
  %139 = vmatprep.subr.bf16.mxu0 0
  %140 = vmatpush2.bf16.msra.mxu0 0
  %141 = vmatprep.mubr.bf16.mxu0 0
  %142 = vmatmul.mubr.bf16.gmra.mxu0 %v26
  %v143 = vpop.f32.mrf.mxu0
  %v144 = vadd.f32 0.0, %v143
  %v145 = vpop.f32.mrf.mxu0
  %v146 = vpop.f32.mrf.mxu0
  %v147 = vpop.f32.mrf.mxu0
  %148 = vdwg.mxu0
  %v165 = vunpack.c.l.b16 %v29
  %v166 = vunpack.c.l.b16 %v30
  %v167 = vunpack.c.l.b16 %v31
  %v168 = vunpack.c.l.b16 %v32
  %v169 = vunpack.c.l.b16 %v33
  %v170 = vunpack.c.l.b16 %v34
  %v171 = vunpack.c.l.b16 %v35
  %v172 = vunpack.c.l.b16 %v36
  %v173 = vunpack.c.l.b16 %v37
  %v174 = vunpack.c.l.b16 %v38
  %v175 = vunpack.c.l.b16 %v39
  %v176 = vunpack.c.l.b16 %v40
  %v177 = vunpack.c.l.b16 %v41
  %v178 = vunpack.c.l.b16 %v42
  %v179 = vunpack.c.l.b16 %v43
  %v180 = vunpack.c.l.b16 %v44
  %v181 = vpack.c.b16 %v166, %v165
  %v182 = vpack.c.b16 %v168, %v167
  %v183 = vpack.c.b16 %v170, %v169
  %v184 = vpack.c.b16 %v172, %v171
  %v185 = vpack.c.b16 %v174, %v173
  %v186 = vpack.c.b16 %v176, %v175
  %v187 = vpack.c.b16 %v178, %v177
  %v188 = vpack.c.b16 %v180, %v179
  %197 = vmatprep.subr.bf16.mxu0 0
  %198 = vmatpush1.bf16.msra.mxu0 %v188
  %199 = vmatprep.subr.bf16.mxu0 0
  %200 = vmatpush1.bf16.msra.mxu0 %v187
  %201 = vmatprep.subr.bf16.mxu0 0
  %202 = vmatpush1.bf16.msra.mxu0 %v186
  %203 = vmatprep.subr.bf16.mxu0 0
  %204 = vmatpush1.bf16.msra.mxu0 %v185
  %205 = vmatprep.subr.bf16.mxu0 0
  %206 = vmatpush1.bf16.msra.mxu0 %v184
  %207 = vmatprep.subr.bf16.mxu0 0
  %208 = vmatpush1.bf16.msra.mxu0 %v183
  %209 = vmatprep.subr.bf16.mxu0 0
  %210 = vmatpush1.bf16.msra.mxu0 %v182
  %211 = vmatprep.subr.bf16.mxu0 0
  %212 = vmatpush1.bf16.msra.mxu0 %v181
  %213 = vmatprep.subr.bf16.mxu0 0
  %214 = vmatpush2.bf16.msra.mxu0 0
  %215 = vmatprep.subr.bf16.mxu0 0
  %216 = vmatpush2.bf16.msra.mxu0 0
  %217 = vmatprep.subr.bf16.mxu0 0
  %218 = vmatpush2.bf16.msra.mxu0 0
  %219 = vmatprep.subr.bf16.mxu0 0
  %220 = vmatpush2.bf16.msra.mxu0 0
  %221 = vmatprep.subr.bf16.mxu0 0
  %222 = vmatpush2.bf16.msra.mxu0 0
  %223 = vmatprep.subr.bf16.mxu0 0
  %224 = vmatpush2.bf16.msra.mxu0 0
  %225 = vmatprep.subr.bf16.mxu0 0
  %226 = vmatpush2.bf16.msra.mxu0 0
  %227 = vmatprep.subr.bf16.mxu0 0
  %228 = vmatpush2.bf16.msra.mxu0 0
  %229 = vmatprep.mubr.bf16.mxu0 0
  %230 = vmatmul.mubr.bf16.gmra.mxu0 %v22
  %v231 = vpop.f32.mrf.mxu0
  %v232 = vadd.f32 %v144, %v231
  %v233 = vpop.f32.mrf.mxu0
  %v234 = vpop.f32.mrf.mxu0
  %v235 = vpop.f32.mrf.mxu0
  %236 = vdwg.mxu0
  %v237 = vld [vmem:[%s1 + $0x80] sm:$0xf]
  %v238 = vld [vmem:[%s1 + $0x84] sm:$0xf]
  %v239 = vld [vmem:[%s1 + $0x88] sm:$0xf]
  %v240 = vld [vmem:[%s1 + $0x8c] sm:$0xf]
  %v241 = vld [vmem:[%s1 + $0x90] sm:$0xf]
  %v242 = vld [vmem:[%s1 + $0x94] sm:$0xf]
  %v243 = vld [vmem:[%s1 + $0x98] sm:$0xf]
  %v244 = vld [vmem:[%s1 + $0x9c] sm:$0xf]
  %v245 = vld [vmem:[%s1 + $0xa0] sm:$0xf]
  %v246 = vld [vmem:[%s1 + $0xa4] sm:$0xf]
  %v247 = vld [vmem:[%s1 + $0xa8] sm:$0xf]
  %v248 = vld [vmem:[%s1 + $0xac] sm:$0xf]
  %v249 = vld [vmem:[%s1 + $0xb0] sm:$0xf]
  %v250 = vld [vmem:[%s1 + $0xb4] sm:$0xf]
  %v251 = vld [vmem:[%s1 + $0xb8] sm:$0xf]
  %v252 = vld [vmem:[%s1 + $0xbc] sm:$0xf]
  %v269 = vunpack.c.l.b16 %v237
  %v270 = vunpack.c.l.b16 %v238
  %v271 = vunpack.c.l.b16 %v239
  %v272 = vunpack.c.l.b16 %v240
  %v273 = vunpack.c.l.b16 %v241
  %v274 = vunpack.c.l.b16 %v242
  %v275 = vunpack.c.l.b16 %v243
  %v276 = vunpack.c.l.b16 %v244
  %v277 = vunpack.c.l.b16 %v245
  %v278 = vunpack.c.l.b16 %v246
  %v279 = vunpack.c.l.b16 %v247
  %v280 = vunpack.c.l.b16 %v248
  %v281 = vunpack.c.l.b16 %v249
  %v282 = vunpack.c.l.b16 %v250
  %v283 = vunpack.c.l.b16 %v251
  %v284 = vunpack.c.l.b16 %v252
  %v285 = vpack.c.b16 %v270, %v269
  %v286 = vpack.c.b16 %v272, %v271
  %v287 = vpack.c.b16 %v274, %v273
  %v288 = vpack.c.b16 %v276, %v275
  %v289 = vpack.c.b16 %v278, %v277
  %v290 = vpack.c.b16 %v280, %v279
  %v291 = vpack.c.b16 %v282, %v281
  %v292 = vpack.c.b16 %v284, %v283
  %301 = vmatprep.subr.bf16.mxu0 0
  %302 = vmatpush1.bf16.msra.mxu0 %v292
  %303 = vmatprep.subr.bf16.mxu0 0
  %304 = vmatpush1.bf16.msra.mxu0 %v291
  %305 = vmatprep.subr.bf16.mxu0 0
  %306 = vmatpush1.bf16.msra.mxu0 %v290
  %307 = vmatprep.subr.bf16.mxu0 0
  %308 = vmatpush1.bf16.msra.mxu0 %v289
  %309 = vmatprep.subr.bf16.mxu0 0
  %310 = vmatpush1.bf16.msra.mxu0 %v288
  %311 = vmatprep.subr.bf16.mxu0 0
  %312 = vmatpush1.bf16.msra.mxu0 %v287
  %313 = vmatprep.subr.bf16.mxu0 0
  %314 = vmatpush1.bf16.msra.mxu0 %v286
  %315 = vmatprep.subr.bf16.mxu0 0
  %316 = vmatpush1.bf16.msra.mxu0 %v285
  %317 = vmatprep.subr.bf16.mxu0 0
  %318 = vmatpush2.bf16.msra.mxu0 0
  %319 = vmatprep.subr.bf16.mxu0 0
  %320 = vmatpush2.bf16.msra.mxu0 0
  %321 = vmatprep.subr.bf16.mxu0 0
  %322 = vmatpush2.bf16.msra.mxu0 0
  %323 = vmatprep.subr.bf16.mxu0 0
  %324 = vmatpush2.bf16.msra.mxu0 0
  %325 = vmatprep.subr.bf16.mxu0 0
  %326 = vmatpush2.bf16.msra.mxu0 0
  %327 = vmatprep.subr.bf16.mxu0 0
  %328 = vmatpush2.bf16.msra.mxu0 0
  %329 = vmatprep.subr.bf16.mxu0 0
  %330 = vmatpush2.bf16.msra.mxu0 0
  %331 = vmatprep.subr.bf16.mxu0 0
  %332 = vmatpush2.bf16.msra.mxu0 0
  %333 = vmatprep.mubr.bf16.mxu0 0
  %334 = vmatmul.mubr.bf16.gmra.mxu0 %v28
  %v335 = vpop.f32.mrf.mxu0
  %v336 = vadd.f32 0.0, %v335
  %v337 = vpop.f32.mrf.mxu0
  %v338 = vpop.f32.mrf.mxu0
  %v339 = vpop.f32.mrf.mxu0
  %340 = vdwg.mxu0
  %v341 = vadd.f32 %v232, %v336
  %v342 = vld [vmem:[%s1 + $0xc0] sm:$0xf]
  %v343 = vld [vmem:[%s1 + $0xc4] sm:$0xf]
  %v344 = vld [vmem:[%s1 + $0xc8] sm:$0xf]
  %v345 = vld [vmem:[%s1 + $0xcc] sm:$0xf]
  %v346 = vld [vmem:[%s1 + $0xd0] sm:$0xf]
  %v347 = vld [vmem:[%s1 + $0xd4] sm:$0xf]
  %v348 = vld [vmem:[%s1 + $0xd8] sm:$0xf]
  %v349 = vld [vmem:[%s1 + $0xdc] sm:$0xf]
  %v350 = vld [vmem:[%s1 + $0xe0] sm:$0xf]
  %v351 = vld [vmem:[%s1 + $0xe4] sm:$0xf]
  %v352 = vld [vmem:[%s1 + $0xe8] sm:$0xf]
  %v353 = vld [vmem:[%s1 + $0xec] sm:$0xf]
  %v354 = vld [vmem:[%s1 + $0xf0] sm:$0xf]
  %v355 = vld [vmem:[%s1 + $0xf4] sm:$0xf]
  %v356 = vld [vmem:[%s1 + $0xf8] sm:$0xf]
  %v357 = vld [vmem:[%s1 + $0xfc] sm:$0xf]
  %v374 = vunpack.c.l.b16 %v342
  %v375 = vunpack.c.l.b16 %v343
  %v376 = vunpack.c.l.b16 %v344
  %v377 = vunpack.c.l.b16 %v345
  %v378 = vunpack.c.l.b16 %v346
  %v379 = vunpack.c.l.b16 %v347
  %v380 = vunpack.c.l.b16 %v348
  %v381 = vunpack.c.l.b16 %v349
  %v382 = vunpack.c.l.b16 %v350
  %v383 = vunpack.c.l.b16 %v351
  %v384 = vunpack.c.l.b16 %v352
  %v385 = vunpack.c.l.b16 %v353
  %v386 = vunpack.c.l.b16 %v354
  %v387 = vunpack.c.l.b16 %v355
  %v388 = vunpack.c.l.b16 %v356
  %v389 = vunpack.c.l.b16 %v357
  %v390 = vpack.c.b16 %v375, %v374
  %v391 = vpack.c.b16 %v377, %v376
  %v392 = vpack.c.b16 %v379, %v378
  %v393 = vpack.c.b16 %v381, %v380
  %v394 = vpack.c.b16 %v383, %v382
  %v395 = vpack.c.b16 %v385, %v384
  %v396 = vpack.c.b16 %v387, %v386
  %v397 = vpack.c.b16 %v389, %v388
  %406 = vmatprep.subr.bf16.mxu0 0
  %407 = vmatpush1.bf16.msra.mxu0 %v397
  %408 = vmatprep.subr.bf16.mxu0 0
  %409 = vmatpush1.bf16.msra.mxu0 %v396
  %410 = vmatprep.subr.bf16.mxu0 0
  %411 = vmatpush1.bf16.msra.mxu0 %v395
  %412 = vmatprep.subr.bf16.mxu0 0
  %413 = vmatpush1.bf16.msra.mxu0 %v394
  %414 = vmatprep.subr.bf16.mxu0 0
  %415 = vmatpush1.bf16.msra.mxu0 %v393
  %416 = vmatprep.subr.bf16.mxu0 0
  %417 = vmatpush1.bf16.msra.mxu0 %v392
  %418 = vmatprep.subr.bf16.mxu0 0
  %419 = vmatpush1.bf16.msra.mxu0 %v391
  %420 = vmatprep.subr.bf16.mxu0 0
  %421 = vmatpush1.bf16.msra.mxu0 %v390
  %422 = vmatprep.subr.bf16.mxu0 0
  %423 = vmatpush2.bf16.msra.mxu0 0
  %424 = vmatprep.subr.bf16.mxu0 0
  %425 = vmatpush2.bf16.msra.mxu0 0
  %426 = vmatprep.subr.bf16.mxu0 0
  %427 = vmatpush2.bf16.msra.mxu0 0
  %428 = vmatprep.subr.bf16.mxu0 0
  %429 = vmatpush2.bf16.msra.mxu0 0
  %430 = vmatprep.subr.bf16.mxu0 0
  %431 = vmatpush2.bf16.msra.mxu0 0
  %432 = vmatprep.subr.bf16.mxu0 0
  %433 = vmatpush2.bf16.msra.mxu0 0
  %434 = vmatprep.subr.bf16.mxu0 0
  %435 = vmatpush2.bf16.msra.mxu0 0
  %436 = vmatprep.subr.bf16.mxu0 0
  %437 = vmatpush2.bf16.msra.mxu0 0
  %438 = vmatprep.mubr.bf16.mxu0 0
  %439 = vmatmul.mubr.bf16.gmra.mxu0 %v24
  %v440 = vpop.f32.mrf.mxu0
  %v441 = vadd.f32 0.0, %v440
  %v442 = vpop.f32.mrf.mxu0
  %v443 = vpop.f32.mrf.mxu0
  %v444 = vpop.f32.mrf.mxu0
  %445 = vdwg.mxu0
  %v446 = vadd.f32 %v341, %v441
  %v447 = vld [vmem:[%s2] sm:$0x1]
  %v449 = vlaneseq
  %v450 = vshrl.u32 %v449, 7
  %v451 = vsub.s32 0, %v450
  %v452 = vrot.slane %v447, %v451
  %v454 = vadd.f32 %v446, %v452
  %v455 = vmax.f32 %v454, 0.0
  %v456 = vpack.c.bf16 %v455, %v455
  %v457 = vld [vmem:[%s3] sm:$0xf]
  %v458 = vld [vmem:[%s3 + $0x4] sm:$0xf]
  %v459 = vld [vmem:[%s3 + $0x8] sm:$0xf]
  %v460 = vld [vmem:[%s3 + $0xc] sm:$0xf]
  %v461 = vld [vmem:[%s3 + $0x10] sm:$0xf]
  %v462 = vld [vmem:[%s3 + $0x14] sm:$0xf]
  %v463 = vld [vmem:[%s3 + $0x18] sm:$0xf]
  %v464 = vld [vmem:[%s3 + $0x1c] sm:$0xf]
  %v465 = vld [vmem:[%s3 + $0x20] sm:$0xf]
  %v466 = vld [vmem:[%s3 + $0x24] sm:$0xf]
  %v467 = vld [vmem:[%s3 + $0x28] sm:$0xf]
  %v468 = vld [vmem:[%s3 + $0x2c] sm:$0xf]
  %v469 = vld [vmem:[%s3 + $0x30] sm:$0xf]
  %v470 = vld [vmem:[%s3 + $0x34] sm:$0xf]
  %v471 = vld [vmem:[%s3 + $0x38] sm:$0xf]
  %v472 = vld [vmem:[%s3 + $0x3c] sm:$0xf]
  %v473 = vld [vmem:[%s4] sm:$0x1]
  %v475 = vlaneseq
  %v476 = vshrl.u32 %v475, 7
  %v477 = vsub.s32 0, %v476
  %v478 = vrot.slane %v473, %v477
  %v496 = vunpack.c.l.b16 %v457
  %v497 = vunpack.c.l.b16 %v458
  %v498 = vunpack.c.l.b16 %v459
  %v499 = vunpack.c.l.b16 %v460
  %v500 = vunpack.c.l.b16 %v461
  %v501 = vunpack.c.l.b16 %v462
  %v502 = vunpack.c.l.b16 %v463
  %v503 = vunpack.c.l.b16 %v464
  %v504 = vunpack.c.l.b16 %v465
  %v505 = vunpack.c.l.b16 %v466
  %v506 = vunpack.c.l.b16 %v467
  %v507 = vunpack.c.l.b16 %v468
  %v508 = vunpack.c.l.b16 %v469
  %v509 = vunpack.c.l.b16 %v470
  %v510 = vunpack.c.l.b16 %v471
  %v511 = vunpack.c.l.b16 %v472
  %v512 = vpack.c.b16 %v497, %v496
  %v513 = vpack.c.b16 %v499, %v498
  %v514 = vpack.c.b16 %v501, %v500
  %v515 = vpack.c.b16 %v503, %v502
  %v516 = vpack.c.b16 %v505, %v504
  %v517 = vpack.c.b16 %v507, %v506
  %v518 = vpack.c.b16 %v509, %v508
  %v519 = vpack.c.b16 %v511, %v510
  %528 = vmatprep.subr.bf16.mxu0 0
  %529 = vmatpush1.bf16.msra.mxu0 %v519
  %530 = vmatprep.subr.bf16.mxu0 0
  %531 = vmatpush1.bf16.msra.mxu0 %v518
  %532 = vmatprep.subr.bf16.mxu0 0
  %533 = vmatpush1.bf16.msra.mxu0 %v517
  %534 = vmatprep.subr.bf16.mxu0 0
  %535 = vmatpush1.bf16.msra.mxu0 %v516
  %536 = vmatprep.subr.bf16.mxu0 0
  %537 = vmatpush1.bf16.msra.mxu0 %v515
  %538 = vmatprep.subr.bf16.mxu0 0
  %539 = vmatpush1.bf16.msra.mxu0 %v514
  %540 = vmatprep.subr.bf16.mxu0 0
  %541 = vmatpush1.bf16.msra.mxu0 %v513
  %542 = vmatprep.subr.bf16.mxu0 0
  %543 = vmatpush1.bf16.msra.mxu0 %v512
  %544 = vmatprep.subr.bf16.mxu0 0
  %545 = vmatpush2.bf16.msra.mxu0 0
  %546 = vmatprep.subr.bf16.mxu0 0
  %547 = vmatpush2.bf16.msra.mxu0 0
  %548 = vmatprep.subr.bf16.mxu0 0
  %549 = vmatpush2.bf16.msra.mxu0 0
  %550 = vmatprep.subr.bf16.mxu0 0
  %551 = vmatpush2.bf16.msra.mxu0 0
  %552 = vmatprep.subr.bf16.mxu0 0
  %553 = vmatpush2.bf16.msra.mxu0 0
  %554 = vmatprep.subr.bf16.mxu0 0
  %555 = vmatpush2.bf16.msra.mxu0 0
  %556 = vmatprep.subr.bf16.mxu0 0
  %557 = vmatpush2.bf16.msra.mxu0 0
  %558 = vmatprep.subr.bf16.mxu0 0
  %559 = vmatpush2.bf16.msra.mxu0 0
  %560 = vmatprep.mubr.bf16.mxu0 0
  %561 = vmatmul.mubr.bf16.gmra.mxu0 %v456
  %v562 = vpop.f32.mrf.mxu0
  %v563 = vadd.f32 %v478, %v562
  %v564 = vpop.f32.mrf.mxu0
  %v565 = vpop.f32.mrf.mxu0
  %v566 = vpop.f32.mrf.mxu0
  %567 = vdwg.mxu0
  %568 = vst [vmem:[%s5] sm:$0xff] %v563
  // Predicated region
  $region22: #{image_actor_forward.3} parent=0 // pred_check
    _
  $region23: #{image_actor_forward.3} parent=0 // pred_check_branch
    %570 = sbr.rel (0) target = $region25
  $region24: #{image_actor_forward.3} parent=0 // pred_region
    _
  $region25: #{image_actor_forward.3} parent=0 // pred_fallthru
    _
  // Predicated region
  $region26: #{image_actor_forward.3} parent=0 // pred_check
    _
  $region27: #{image_actor_forward.3} parent=0 // pred_check_branch
    %572 = sbr.rel (0) target = $region29
  $region28: #{image_actor_forward.3} parent=0 // pred_region
    _
  $region29: #{image_actor_forward.3} parent=0 // pred_fallthru
    _

// kernel: image_actor_forward.2
$region0: #{image_actor_forward.2}
  #allocation0 [shape = 'u32[]', space=smem, size = 0x4, offset = 0x4, fixed_abs, tag = 'smem constant byte address 0x4 - core index']
  #allocation1 [shape = 'u32[144,128]{1,0:T(1,128)}', space=vmem, size = 0x12000, scoped, tag = 'internal scratch']
  #allocation2 [shape = 'f32[16,128]{1,0:T(8,128)}', space=vmem, size = 0x2000, scoped, tag = 'scratch operand']
  %s0 = inlined_call_operand.vmem [shape: bf16[32,768], index: 0, kind: input, shape index: {}]
  %s1 = inlined_call_operand.vmem [shape: bf16[768,256], index: 1, kind: input, shape index: {}]
  %s2 = inlined_call_operand.vmem [shape: f32[1,256], index: 2, kind: input, shape index: {}]
  %s3 = inlined_call_operand.vmem [shape: bf16[2,128,128], index: 3, kind: input, shape index: {}]
  %s4 = inlined_call_operand.vmem [shape: f32[2,1,128], index: 4, kind: input, shape index: {}]
  %s5 = inlined_call_operand.vmem [shape: bf16[2,128,128], index: 5, kind: input, shape index: {}]
  %s6 = inlined_call_operand.vmem [shape: f32[2,1,128], index: 6, kind: input, shape index: {}]
  %s7 = inlined_call_operand.vmem [shape: f32[32,128], index: 7, kind: output, shape index: {}]
  %s8 = sld [smem:[#allocation0]]
  $region148: #{image_actor_forward.2} parent=0
    _
  %s10 = ssub.s32 1, %s8
  %s11 = scalar_select 0, %s10, %s8
  $region1: #{image_actor_forward.2} parent=0
    #allocation3 [shape = 'u8[16384]{0}', space=vmem, size = 0x4000, scoped, tag = 'input window, operand 0']
    #allocation4 [shape = 'u8[131072]{0}', space=vmem, size = 0x20000, scoped, tag = 'input window, operand 1']
    loop: start=0, step=1, limit=8
    $region2: #{image_actor_forward.2} parent=1 // loop_pre_header
      _
    $region3: #{image_actor_forward.2} parent=1 // loop_header
      %s13 = sphi 0, %s17
      %p14 = scmp.ge.s32.totalorder %s13, 8
      %s20 = sphi 0, %s32
      %s21 = sphi 0, %s28
      %s22 = sphi 0, %s20
      %s23 = sphi 0, %s21
      %s24 = sphi 0, %s22
      %s25 = sphi 0, %s23
      %s37 = sphi 0, %s39
      %s40 = sphi 0, %s37
      %s41 = sphi 0, %s40
      %s57 = sphi 0, %s41
      %s65 = sphi 0, %s67
      %s68 = sphi 0, %s65
      %s69 = sphi 0, %s68
      %s85 = sphi 0, %s69
      %s91 = sphi 0, %s93
      %s94 = sphi 0, %s91
      %s95 = sphi 0, %s94
      %s111 = sphi 0, %s95
      %s117 = sphi 0, %s119
      %s120 = sphi 0, %s117
      %s121 = sphi 0, %s120
      %s137 = sphi 0, %s121
      %s143 = sphi 0, %s145
      %s146 = sphi 0, %s143
      %s147 = sphi 0, %s146
      %s163 = sphi 0, %s147
      %s169 = sphi 0, %s171
      %s172 = sphi 0, %s169
      %s173 = sphi 0, %s172
      %s189 = sphi 0, %s173
      %s195 = sphi 0, %s197
      %s198 = sphi 0, %s195
      %s199 = sphi 0, %s198
      %s215 = sphi 0, %s199
      %s221 = sphi 0, %s223
      %s224 = sphi 0, %s221
      %s225 = sphi 0, %s224
      %s241 = sphi 0, %s225
    $region4: #{image_actor_forward.2} parent=1 // loop_header_branch
      %16 = sbr.rel (%p14) target = $region8
    $region5: #{image_actor_forward.2} parent=1 // loop_body
      %s18 = ssub.s32 %s13, 1
      %s19 = ssub.s32 %s13, 2
      %s26 = sadd.s32 1, %s21
      %p27 = scmp.ge.s32.totalorder %s26, 3
      %s28 = scalar_select %p27, 0, %s26
      %s29 = sadd.s32 1, %s20
      %s30 = scalar_select %p27, %s29, %s20
      %p31 = scmp.ge.s32.totalorder %s30, 2
      %s32 = scalar_select %p31, 0, %s30
      %s33 = ssub.s32 %s20, %s32
      %s34 = ssub.s32 %s21, %s28
      %s35 = sor.u32 %s33, %s34
      %p36 = scmp.eq.s32.totalorder %s35, 0
      %s38 = sadd.s32 %s37, 1
      %s39 = scalar_select %p36, %s37, %s38
      %p42 = pneg %p36
      %p43 = scmp.eq.s32.totalorder %s13, 5
      %p44 = por %p42, %p43
      %p45 = scmp.ne.s32.totalorder %s37, %s40
      %p46 = scmp.eq.s32.totalorder %s13, 0
      %p47 = por %p45, %p46
      %p48 = scmp.ne.s32.totalorder %s37, %s40
      %p49 = scmp.eq.s32.totalorder %s18, 5
      %p50 = por %p48, %p49
      %p51 = scmp.ne.s32.totalorder %s40, %s41
      %p52 = scmp.eq.s32.totalorder %s18, 0
      %p53 = por %p51, %p52
      %p54 = scmp.ne.s32.totalorder %s40, %s41
      %p55 = scmp.eq.s32.totalorder %s19, 5
      %p56 = por %p54, %p55
      %p58 = scmp.ne.s32.totalorder %s41, %s57
      %p59 = scmp.eq.s32.totalorder %s19, 0
      %p60 = por %p58, %p59
      %s61 = ssub.s32 %s21, %s28
      %s62 = ssub.s32 %s20, %s32
      %s63 = sor.u32 %s61, %s62
      %p64 = scmp.eq.s32.totalorder %s63, 0
      %s66 = sadd.s32 %s65, 1
      %s67 = scalar_select %p64, %s65, %s66
      %p70 = pneg %p64
      %p71 = scmp.eq.s32.totalorder %s13, 5
      %p72 = por %p70, %p71
      %p73 = scmp.ne.s32.totalorder %s65, %s68
      %p74 = scmp.eq.s32.totalorder %s13, 0
      %p75 = por %p73, %p74
      %p76 = scmp.ne.s32.totalorder %s65, %s68
      %p77 = scmp.eq.s32.totalorder %s18, 5
      %p78 = por %p76, %p77
      %p79 = scmp.ne.s32.totalorder %s68, %s69
      %p80 = scmp.eq.s32.totalorder %s18, 0
      %p81 = por %p79, %p80
      %p82 = scmp.ne.s32.totalorder %s68, %s69
      %p83 = scmp.eq.s32.totalorder %s19, 5
      %p84 = por %p82, %p83
      %p86 = scmp.ne.s32.totalorder %s69, %s85
      %p87 = scmp.eq.s32.totalorder %s19, 0
      %p88 = por %p86, %p87
      %s89 = ssub.s32 %s20, %s32
      %p90 = scmp.eq.s32.totalorder %s89, 0
      %s92 = sadd.s32 %s91, 1
      %s93 = scalar_select %p90, %s91, %s92
      %p96 = pneg %p90
      %p97 = scmp.eq.s32.totalorder %s13, 5
      %p98 = por %p96, %p97
      %p99 = scmp.ne.s32.totalorder %s91, %s94
      %p100 = scmp.eq.s32.totalorder %s13, 0
      %p101 = por %p99, %p100
      %p102 = scmp.ne.s32.totalorder %s91, %s94
      %p103 = scmp.eq.s32.totalorder %s18, 5
      %p104 = por %p102, %p103
      %p105 = scmp.ne.s32.totalorder %s94, %s95
      %p106 = scmp.eq.s32.totalorder %s18, 0
      %p107 = por %p105, %p106
      %p108 = scmp.ne.s32.totalorder %s94, %s95
      %p109 = scmp.eq.s32.totalorder %s19, 5
      %p110 = por %p108, %p109
      %p112 = scmp.ne.s32.totalorder %s95, %s111
      %p113 = scmp.eq.s32.totalorder %s19, 0
      %p114 = por %p112, %p113
      %s115 = ssub.s32 %s20, %s32
      %p116 = scmp.eq.s32.totalorder %s115, 0
      %s118 = sadd.s32 %s117, 1
      %s119 = scalar_select %p116, %s117, %s118
      %p122 = pneg %p116
      %p123 = scmp.eq.s32.totalorder %s13, 5
      %p124 = por %p122, %p123
      %p125 = scmp.ne.s32.totalorder %s117, %s120
      %p126 = scmp.eq.s32.totalorder %s13, 0
      %p127 = por %p125, %p126
      %p128 = scmp.ne.s32.totalorder %s117, %s120
      %p129 = scmp.eq.s32.totalorder %s18, 5
      %p130 = por %p128, %p129
      %p131 = scmp.ne.s32.totalorder %s120, %s121
      %p132 = scmp.eq.s32.totalorder %s18, 0
      %p133 = por %p131, %p132
      %p134 = scmp.ne.s32.totalorder %s120, %s121
      %p135 = scmp.eq.s32.totalorder %s19, 5
      %p136 = por %p134, %p135
      %p138 = scmp.ne.s32.totalorder %s121, %s137
      %p139 = scmp.eq.s32.totalorder %s19, 0
      %p140 = por %p138, %p139
      %s141 = ssub.s32 %s20, %s32
      %p142 = scmp.eq.s32.totalorder %s141, 0
      %s144 = sadd.s32 %s143, 1
      %s145 = scalar_select %p142, %s143, %s144
      %p148 = pneg %p142
      %p149 = scmp.eq.s32.totalorder %s13, 5
      %p150 = por %p148, %p149
      %p151 = scmp.ne.s32.totalorder %s143, %s146
      %p152 = scmp.eq.s32.totalorder %s13, 0
      %p153 = por %p151, %p152
      %p154 = scmp.ne.s32.totalorder %s143, %s146
      %p155 = scmp.eq.s32.totalorder %s18, 5
      %p156 = por %p154, %p155
      %p157 = scmp.ne.s32.totalorder %s146, %s147
      %p158 = scmp.eq.s32.totalorder %s18, 0
      %p159 = por %p157, %p158
      %p160 = scmp.ne.s32.totalorder %s146, %s147
      %p161 = scmp.eq.s32.totalorder %s19, 5
      %p162 = por %p160, %p161
      %p164 = scmp.ne.s32.totalorder %s147, %s163
      %p165 = scmp.eq.s32.totalorder %s19, 0
      %p166 = por %p164, %p165
      %s167 = ssub.s32 %s20, %s32
      %p168 = scmp.eq.s32.totalorder %s167, 0
      %s170 = sadd.s32 %s169, 1
      %s171 = scalar_select %p168, %s169, %s170
      %p174 = pneg %p168
      %p175 = scmp.eq.s32.totalorder %s13, 5
      %p176 = por %p174, %p175
      %p177 = scmp.ne.s32.totalorder %s169, %s172
      %p178 = scmp.eq.s32.totalorder %s13, 0
      %p179 = por %p177, %p178
      %p180 = scmp.ne.s32.totalorder %s169, %s172
      %p181 = scmp.eq.s32.totalorder %s18, 5
      %p182 = por %p180, %p181
      %p183 = scmp.ne.s32.totalorder %s172, %s173
      %p184 = scmp.eq.s32.totalorder %s18, 0
      %p185 = por %p183, %p184
      %p186 = scmp.ne.s32.totalorder %s172, %s173
      %p187 = scmp.eq.s32.totalorder %s19, 5
      %p188 = por %p186, %p187
      %p190 = scmp.ne.s32.totalorder %s173, %s189
      %p191 = scmp.eq.s32.totalorder %s19, 0
      %p192 = por %p190, %p191
      %s193 = ssub.s32 %s20, %s32
      %p194 = scmp.eq.s32.totalorder %s193, 0
      %s196 = sadd.s32 %s195, 1
      %s197 = scalar_select %p194, %s195, %s196
      %p200 = pneg %p194
      %p201 = scmp.eq.s32.totalorder %s13, 5
      %p202 = por %p200, %p201
      %p203 = scmp.ne.s32.totalorder %s195, %s198
      %p204 = scmp.eq.s32.totalorder %s13, 0
      %p205 = por %p203, %p204
      %p206 = scmp.ne.s32.totalorder %s195, %s198
      %p207 = scmp.eq.s32.totalorder %s18, 5
      %p208 = por %p206, %p207
      %p209 = scmp.ne.s32.totalorder %s198, %s199
      %p210 = scmp.eq.s32.totalorder %s18, 0
      %p211 = por %p209, %p210
      %p212 = scmp.ne.s32.totalorder %s198, %s199
      %p213 = scmp.eq.s32.totalorder %s19, 5
      %p214 = por %p212, %p213
      %p216 = scmp.ne.s32.totalorder %s199, %s215
      %p217 = scmp.eq.s32.totalorder %s19, 0
      %p218 = por %p216, %p217
      %s219 = ssub.s32 %s20, %s32
      %p220 = scmp.eq.s32.totalorder %s219, 0
      %s222 = sadd.s32 %s221, 1
      %s223 = scalar_select %p220, %s221, %s222
      %p226 = pneg %p220
      %p227 = scmp.eq.s32.totalorder %s13, 5
      %p228 = por %p226, %p227
      %p229 = scmp.ne.s32.totalorder %s221, %s224
      %p230 = scmp.eq.s32.totalorder %s13, 0
      %p231 = por %p229, %p230
      %p232 = scmp.ne.s32.totalorder %s221, %s224
      %p233 = scmp.eq.s32.totalorder %s18, 5
      %p234 = por %p232, %p233
      %p235 = scmp.ne.s32.totalorder %s224, %s225
      %p236 = scmp.eq.s32.totalorder %s18, 0
      %p237 = por %p235, %p236
      %p238 = scmp.ne.s32.totalorder %s224, %s225
      %p239 = scmp.eq.s32.totalorder %s19, 5
      %p240 = por %p238, %p239
      %p242 = scmp.ne.s32.totalorder %s225, %s241
      %p243 = scmp.eq.s32.totalorder %s19, 0
      %p244 = por %p242, %p243
      %p245 = scmp.le.s32.totalorder 1, %s13
      %p246 = scmp.lt.s32.totalorder %s13, 7
      %p247 = pnand %p245, %p246
      %p248 = pneg %p247
      // Predicated region
      $region9: #{image_actor_forward.2} parent=5 // pred_check
        _
      $region10: #{image_actor_forward.2} parent=5 // pred_check_branch
        %250 = sbr.rel (%p247) target = $region12
      $region11: #{image_actor_forward.2} parent=5 // pred_region
        %s251 = ssub.s32 %s13, 1
      $region12: #{image_actor_forward.2} parent=5 // pred_fallthru
        _
      %p252 = scmp.lt.s32.totalorder %s13, 6
      // Predicated region
      $region13: #{image_actor_forward.2} parent=5 // pred_check
        %p253 = pneg %p252
      $region14: #{image_actor_forward.2} parent=5 // pred_check_branch
        %255 = sbr.rel (%p253) target = $region16
      $region15: #{image_actor_forward.2} parent=5 // pred_region
        // Predicated region
        $region17: #{image_actor_forward.2} parent=15 // pred_check
          %p256 = pneg %p47
        $region18: #{image_actor_forward.2} parent=15 // pred_check_branch
          %258 = sbr.rel (%p256) target = $region20
        $region19: #{image_actor_forward.2} parent=15 // pred_region
          %s259 = sand.u32 %s37, 1
          %s260 = sand.u32 %s37, 1
          %s261 = smul.addr %s260, 16
          %s262 = scalar_lea.vmem [#allocation3], %s261
          %s263 = smul.u32 2, %s20
          %s264 = smul.u32 2, %s21
          %s265 = smul.addr %s263, 6
          %s266 = sadd.s32 %s264, %s265
          %s267 = smul.addr %s266, 4
          %s268 = scalar_lea.vmem %s0, %s267
          // Predicated region
          $region21: #{image_actor_forward.2} parent=19 // pred_check
            _
          $region22: #{image_actor_forward.2} parent=19 // pred_check_branch
            %270 = sbr.rel (0) target = $region24
          $region23: #{image_actor_forward.2} parent=19 // pred_region
            // Predicated region
            $region25: #{image_actor_forward.2} parent=23 // pred_check
              _
            $region26: #{image_actor_forward.2} parent=23 // pred_check_branch
              %272 = sbr.rel (0) target = $region28
            $region27: #{image_actor_forward.2} parent=23 // pred_region
              // Predicated region
              $region40: #{image_actor_forward.2} parent=27 // pred_check
                _
              $region41: #{image_actor_forward.2} parent=27 // pred_check_branch
                %290 = sbr.rel (0) target = $region43
              $region42: #{image_actor_forward.2} parent=27 // pred_region
                loop: start=0, step=1, limit=1
                $region44: #{image_actor_forward.2} parent=42 // loop_pre_header
                  _
                $region45: #{image_actor_forward.2} parent=42 // loop_header
                  %s292 = sphi 0, %s296
                  %p293 = scmp.ge.s32.totalorder %s292, 1
                  %s297 = sphi %s268, %s268
                  %s298 = sphi %s262, %s262
                $region46: #{image_actor_forward.2} parent=42 // loop_header_branch
                  %295 = sbr.rel (%p293) target = $region50
                $region47: #{image_actor_forward.2} parent=42 // loop_body
                  %v299 = vld [vmem:[%s297] sm:$0xff]
                  %300 = vst [vmem:[%s298] sm:$0xff] %v299
                  %v301 = vld [vmem:[%s297 + $0x18] sm:$0xff]
                  %302 = vst [vmem:[%s298 + $0x8] sm:$0xff] %v301
                $region48: #{image_actor_forward.2} parent=42 // loop_footer
                  %s296 = sadd.s32 1, %s292
                $region49: #{image_actor_forward.2} parent=42 // loop_footer_branch
                  %291 = sbr.rel target = $region45
                $region50: #{image_actor_forward.2} parent=42 // loop_exit
                  _
              $region43: #{image_actor_forward.2} parent=27 // pred_fallthru
                _
              // Predicated region
              $region51: #{image_actor_forward.2} parent=27 // pred_check
                _
              $region52: #{image_actor_forward.2} parent=27 // pred_check_branch
                %304 = sbr.rel target = $region54
              $region53: #{image_actor_forward.2} parent=27 // pred_region
                _
              $region54: #{image_actor_forward.2} parent=27 // pred_fallthru
                _
            $region28: #{image_actor_forward.2} parent=23 // pred_fallthru
              _
            // Predicated region
            $region29: #{image_actor_forward.2} parent=23 // pred_check
              _
            $region30: #{image_actor_forward.2} parent=23 // pred_check_branch
              %274 = sbr.rel target = $region32
            $region31: #{image_actor_forward.2} parent=23 // pred_region
              %s276 = ssub.s32 256, 1
              loop: start=0, step=1, limit=1
              $region33: #{image_actor_forward.2} parent=31 // loop_pre_header
                _
              $region34: #{image_actor_forward.2} parent=31 // loop_header
                %s278 = sphi 0, %s282
                %p279 = scmp.ge.s32.totalorder %s278, 1
                %s283 = sphi %s268, %s268
                %s284 = sphi %s262, %s262
              $region35: #{image_actor_forward.2} parent=31 // loop_header_branch
                %281 = sbr.rel (%p279) target = $region39
              $region36: #{image_actor_forward.2} parent=31 // loop_body
                %v285 = vld [vmem:[%s283] sm:%s276]
                %286 = vst [vmem:[%s284] sm:%s276] %v285
                %v287 = vld [vmem:[%s283 + $0x18] sm:%s276]
                %288 = vst [vmem:[%s284 + $0x8] sm:%s276] %v287
              $region37: #{image_actor_forward.2} parent=31 // loop_footer
                %s282 = sadd.s32 1, %s278
              $region38: #{image_actor_forward.2} parent=31 // loop_footer_branch
                %277 = sbr.rel target = $region34
              $region39: #{image_actor_forward.2} parent=31 // loop_exit
                _
            $region32: #{image_actor_forward.2} parent=23 // pred_fallthru
              _
          $region24: #{image_actor_forward.2} parent=19 // pred_fallthru
            _
          %305 = vnop
        $region20: #{image_actor_forward.2} parent=15 // pred_fallthru
          _
        // Predicated region
        $region55: #{image_actor_forward.2} parent=15 // pred_check
          %p306 = pneg %p75
        $region56: #{image_actor_forward.2} parent=15 // pred_check_branch
          %308 = sbr.rel (%p306) target = $region58
        $region57: #{image_actor_forward.2} parent=15 // pred_region
          %s309 = sand.u32 %s65, 1
          %s310 = sand.u32 %s65, 1
          %s311 = smul.addr %s310, 128
          %s312 = scalar_lea.vmem [#allocation4], %s311
          %s313 = smul.u32 32, %s21
          %s314 = smul.addr %s313, 2
          %s315 = sadd.s32 %s20, %s314
          %s316 = smul.addr %s315, 4
          %s317 = scalar_lea.vmem %s1, %s316
          // Predicated region
          $region59: #{image_actor_forward.2} parent=57 // pred_check
            _
          $region60: #{image_actor_forward.2} parent=57 // pred_check_branch
            %319 = sbr.rel (0) target = $region62
          $region61: #{image_actor_forward.2} parent=57 // pred_region
            // Predicated region
            $region63: #{image_actor_forward.2} parent=61 // pred_check
              _
            $region64: #{image_actor_forward.2} parent=61 // pred_check_branch
              %321 = sbr.rel target = $region66
            $region65: #{image_actor_forward.2} parent=61 // pred_region
              // Predicated region
              $region78: #{image_actor_forward.2} parent=65 // pred_check
                _
              $region79: #{image_actor_forward.2} parent=65 // pred_check_branch
                %399 = sbr.rel (0) target = $region81
              $region80: #{image_actor_forward.2} parent=65 // pred_region
                loop: start=0, step=1, limit=1
                $region82: #{image_actor_forward.2} parent=80 // loop_pre_header
                  _
                $region83: #{image_actor_forward.2} parent=80 // loop_header
                  %s401 = sphi 0, %s405
                  %p402 = scmp.ge.s32.totalorder %s401, 1
                  %s406 = sphi %s317, %s317
                  %s407 = sphi %s312, %s312
                $region84: #{image_actor_forward.2} parent=80 // loop_header_branch
                  %404 = sbr.rel (%p402) target = $region88
                $region85: #{image_actor_forward.2} parent=80 // loop_body
                  _
                $region86: #{image_actor_forward.2} parent=80 // loop_footer
                  %s405 = sadd.s32 1, %s401
                $region87: #{image_actor_forward.2} parent=80 // loop_footer_branch
                  %400 = sbr.rel target = $region83
                $region88: #{image_actor_forward.2} parent=80 // loop_exit
                  _
                %s409 = ssub.s32 16, 1
                loop: start=0, step=1, limit=1
                $region89: #{image_actor_forward.2} parent=80 // loop_pre_header
                  _
                $region90: #{image_actor_forward.2} parent=80 // loop_header
                  %s411 = sphi 0, %s415
                  %p412 = scmp.ge.s32.totalorder %s411, 1
                  %s416 = sphi %s317, %s317
                  %s417 = sphi %s312, %s312
                $region91: #{image_actor_forward.2} parent=80 // loop_header_branch
                  %414 = sbr.rel (%p412) target = $region95
                $region92: #{image_actor_forward.2} parent=80 // loop_body
                  %v418 = vld [vmem:[%s416] sm:%s409]
                  %419 = vst [vmem:[%s417] sm:%s409] %v418
                  %v420 = vld [vmem:[%s416 + $0x8] sm:%s409]
                  %421 = vst [vmem:[%s417 + $0x4] sm:%s409] %v420
                  %v422 = vld [vmem:[%s416 + $0x10] sm:%s409]
                  %423 = vst [vmem:[%s417 + $0x8] sm:%s409] %v422
                  %v424 = vld [vmem:[%s416 + $0x18] sm:%s409]
                  %425 = vst [vmem:[%s417 + $0xc] sm:%s409] %v424
                  %v426 = vld [vmem:[%s416 + $0x20] sm:%s409]
                  %427 = vst [vmem:[%s417 + $0x10] sm:%s409] %v426
                  %v428 = vld [vmem:[%s416 + $0x28] sm:%s409]
                  %429 = vst [vmem:[%s417 + $0x14] sm:%s409] %v428
                  %v430 = vld [vmem:[%s416 + $0x30] sm:%s409]
                  %431 = vst [vmem:[%s417 + $0x18] sm:%s409] %v430
                  %v432 = vld [vmem:[%s416 + $0x38] sm:%s409]
                  %433 = vst [vmem:[%s417 + $0x1c] sm:%s409] %v432
                  %v434 = vld [vmem:[%s416 + $0x40] sm:%s409]
                  %435 = vst [vmem:[%s417 + $0x20] sm:%s409] %v434
                  %v436 = vld [vmem:[%s416 + $0x48] sm:%s409]
                  %437 = vst [vmem:[%s417 + $0x24] sm:%s409] %v436
                  %v438 = vld [vmem:[%s416 + $0x50] sm:%s409]
                  %439 = vst [vmem:[%s417 + $0x28] sm:%s409] %v438
                  %v440 = vld [vmem:[%s416 + $0x58] sm:%s409]
                  %441 = vst [vmem:[%s417 + $0x2c] sm:%s409] %v440
                  %v442 = vld [vmem:[%s416 + $0x60] sm:%s409]
                  %443 = vst [vmem:[%s417 + $0x30] sm:%s409] %v442
                  %v444 = vld [vmem:[%s416 + $0x68] sm:%s409]
                  %445 = vst [vmem:[%s417 + $0x34] sm:%s409] %v444
                  %v446 = vld [vmem:[%s416 + $0x70] sm:%s409]
                  %447 = vst [vmem:[%s417 + $0x38] sm:%s409] %v446
                  %v448 = vld [vmem:[%s416 + $0x78] sm:%s409]
                  %449 = vst [vmem:[%s417 + $0x3c] sm:%s409] %v448
                  %v450 = vld [vmem:[%s416 + $0x80] sm:%s409]
                  %451 = vst [vmem:[%s417 + $0x40] sm:%s409] %v450
                  %v452 = vld [vmem:[%s416 + $0x88] sm:%s409]
                  %453 = vst [vmem:[%s417 + $0x44] sm:%s409] %v452
                  %v454 = vld [vmem:[%s416 + $0x90] sm:%s409]
                  %455 = vst [vmem:[%s417 + $0x48] sm:%s409] %v454
                  %v456 = vld [vmem:[%s416 + $0x98] sm:%s409]
                  %457 = vst [vmem:[%s417 + $0x4c] sm:%s409] %v456
                  %v458 = vld [vmem:[%s416 + $0xa0] sm:%s409]
                  %459 = vst [vmem:[%s417 + $0x50] sm:%s409] %v458
                  %v460 = vld [vmem:[%s416 + $0xa8] sm:%s409]
                  %461 = vst [vmem:[%s417 + $0x54] sm:%s409] %v460
                  %v462 = vld [vmem:[%s416 + $0xb0] sm:%s409]
                  %463 = vst [vmem:[%s417 + $0x58] sm:%s409] %v462
                  %v464 = vld [vmem:[%s416 + $0xb8] sm:%s409]
                  %465 = vst [vmem:[%s417 + $0x5c] sm:%s409] %v464
                  %v466 = vld [vmem:[%s416 + $0xc0] sm:%s409]
                  %467 = vst [vmem:[%s417 + $0x60] sm:%s409] %v466
                  %v468 = vld [vmem:[%s416 + $0xc8] sm:%s409]
                  %469 = vst [vmem:[%s417 + $0x64] sm:%s409] %v468
                  %v470 = vld [vmem:[%s416 + $0xd0] sm:%s409]
                  %471 = vst [vmem:[%s417 + $0x68] sm:%s409] %v470
                  %v472 = vld [vmem:[%s416 + $0xd8] sm:%s409]
                  %473 = vst [vmem:[%s417 + $0x6c] sm:%s409] %v472
                  %v474 = vld [vmem:[%s416 + $0xe0] sm:%s409]
                  %475 = vst [vmem:[%s417 + $0x70] sm:%s409] %v474
                  %v476 = vld [vmem:[%s416 + $0xe8] sm:%s409]
                  %477 = vst [vmem:[%s417 + $0x74] sm:%s409] %v476
                  %v478 = vld [vmem:[%s416 + $0xf0] sm:%s409]
                  %479 = vst [vmem:[%s417 + $0x78] sm:%s409] %v478
                  %v480 = vld [vmem:[%s416 + $0xf8] sm:%s409]
                  %481 = vst [vmem:[%s417 + $0x7c] sm:%s409] %v480
                $region93: #{image_actor_forward.2} parent=80 // loop_footer
                  %s415 = sadd.s32 1, %s411
                $region94: #{image_actor_forward.2} parent=80 // loop_footer_branch
                  %410 = sbr.rel target = $region90
                $region95: #{image_actor_forward.2} parent=80 // loop_exit
                  _
              $region81: #{image_actor_forward.2} parent=65 // pred_fallthru
                _
            $region66: #{image_actor_forward.2} parent=61 // pred_fallthru
              _
            // Predicated region
            $region67: #{image_actor_forward.2} parent=61 // pred_check
              _
            $region68: #{image_actor_forward.2} parent=61 // pred_check_branch
              %323 = sbr.rel (0) target = $region70
            $region69: #{image_actor_forward.2} parent=61 // pred_region
              %s325 = ssub.s32 16, 1
              loop: start=0, step=1, limit=1
              $region71: #{image_actor_forward.2} parent=69 // loop_pre_header
                _
              $region72: #{image_actor_forward.2} parent=69 // loop_header
                %s327 = sphi 0, %s331
                %p328 = scmp.ge.s32.totalorder %s327, 1
                %s332 = sphi %s317, %s317
                %s333 = sphi %s312, %s312
              $region73: #{image_actor_forward.2} parent=69 // loop_header_branch
                %330 = sbr.rel (%p328) target = $region77
              $region74: #{image_actor_forward.2} parent=69 // loop_body
                %v334 = vld [vmem:[%s332] sm:%s325]
                %335 = vst [vmem:[%s333] sm:%s325] %v334
                %v336 = vld [vmem:[%s332 + $0x8] sm:%s325]
                %337 = vst [vmem:[%s333 + $0x4] sm:%s325] %v336
                %v338 = vld [vmem:[%s332 + $0x10] sm:%s325]
                %339 = vst [vmem:[%s333 + $0x8] sm:%s325] %v338
                %v340 = vld [vmem:[%s332 + $0x18] sm:%s325]
                %341 = vst [vmem:[%s333 + $0xc] sm:%s325] %v340
                %v342 = vld [vmem:[%s332 + $0x20] sm:%s325]
                %343 = vst [vmem:[%s333 + $0x10] sm:%s325] %v342
                %v344 = vld [vmem:[%s332 + $0x28] sm:%s325]
                %345 = vst [vmem:[%s333 + $0x14] sm:%s325] %v344
                %v346 = vld [vmem:[%s332 + $0x30] sm:%s325]
                %347 = vst [vmem:[%s333 + $0x18] sm:%s325] %v346
                %v348 = vld [vmem:[%s332 + $0x38] sm:%s325]
                %349 = vst [vmem:[%s333 + $0x1c] sm:%s325] %v348
                %v350 = vld [vmem:[%s332 + $0x40] sm:%s325]
                %351 = vst [vmem:[%s333 + $0x20] sm:%s325] %v350
                %v352 = vld [vmem:[%s332 + $0x48] sm:%s325]
                %353 = vst [vmem:[%s333 + $0x24] sm:%s325] %v352
                %v354 = vld [vmem:[%s332 + $0x50] sm:%s325]
                %355 = vst [vmem:[%s333 + $0x28] sm:%s325] %v354
                %v356 = vld [vmem:[%s332 + $0x58] sm:%s325]
                %357 = vst [vmem:[%s333 + $0x2c] sm:%s325] %v356
                %v358 = vld [vmem:[%s332 + $0x60] sm:%s325]
                %359 = vst [vmem:[%s333 + $0x30] sm:%s325] %v358
                %v360 = vld [vmem:[%s332 + $0x68] sm:%s325]
                %361 = vst [vmem:[%s333 + $0x34] sm:%s325] %v360
                %v362 = vld [vmem:[%s332 + $0x70] sm:%s325]
                %363 = vst [vmem:[%s333 + $0x38] sm:%s325] %v362
                %v364 = vld [vmem:[%s332 + $0x78] sm:%s325]
                %365 = vst [vmem:[%s333 + $0x3c] sm:%s325] %v364
                %v366 = vld [vmem:[%s332 + $0x80] sm:%s325]
                %367 = vst [vmem:[%s333 + $0x40] sm:%s325] %v366
                %v368 = vld [vmem:[%s332 + $0x88] sm:%s325]
                %369 = vst [vmem:[%s333 + $0x44] sm:%s325] %v368
                %v370 = vld [vmem:[%s332 + $0x90] sm:%s325]
                %371 = vst [vmem:[%s333 + $0x48] sm:%s325] %v370
                %v372 = vld [vmem:[%s332 + $0x98] sm:%s325]
                %373 = vst [vmem:[%s333 + $0x4c] sm:%s325] %v372
                %v374 = vld [vmem:[%s332 + $0xa0] sm:%s325]
                %375 = vst [vmem:[%s333 + $0x50] sm:%s325] %v374
                %v376 = vld [vmem:[%s332 + $0xa8] sm:%s325]
                %377 = vst [vmem:[%s333 + $0x54] sm:%s325] %v376
                %v378 = vld [vmem:[%s332 + $0xb0] sm:%s325]
                %379 = vst [vmem:[%s333 + $0x58] sm:%s325] %v378
                %v380 = vld [vmem:[%s332 + $0xb8] sm:%s325]
                %381 = vst [vmem:[%s333 + $0x5c] sm:%s325] %v380
                %v382 = vld [vmem:[%s332 + $0xc0] sm:%s325]
                %383 = vst [vmem:[%s333 + $0x60] sm:%s325] %v382
                %v384 = vld [vmem:[%s332 + $0xc8] sm:%s325]
                %385 = vst [vmem:[%s333 + $0x64] sm:%s325] %v384
                %v386 = vld [vmem:[%s332 + $0xd0] sm:%s325]
                %387 = vst [vmem:[%s333 + $0x68] sm:%s325] %v386
                %v388 = vld [vmem:[%s332 + $0xd8] sm:%s325]
                %389 = vst [vmem:[%s333 + $0x6c] sm:%s325] %v388
                %v390 = vld [vmem:[%s332 + $0xe0] sm:%s325]
                %391 = vst [vmem:[%s333 + $0x70] sm:%s325] %v390
                %v392 = vld [vmem:[%s332 + $0xe8] sm:%s325]
                %393 = vst [vmem:[%s333 + $0x74] sm:%s325] %v392
                %v394 = vld [vmem:[%s332 + $0xf0] sm:%s325]
                %395 = vst [vmem:[%s333 + $0x78] sm:%s325] %v394
                %v396 = vld [vmem:[%s332 + $0xf8] sm:%s325]
                %397 = vst [vmem:[%s333 + $0x7c] sm:%s325] %v396
              $region75: #{image_actor_forward.2} parent=69 // loop_footer
                %s331 = sadd.s32 1, %s327
              $region76: #{image_actor_forward.2} parent=69 // loop_footer_branch
                %326 = sbr.rel target = $region72
              $region77: #{image_actor_forward.2} parent=69 // loop_exit
                _
            $region70: #{image_actor_forward.2} parent=61 // pred_fallthru
              _
          $region62: #{image_actor_forward.2} parent=57 // pred_fallthru
            _
          %482 = vnop
        $region58: #{image_actor_forward.2} parent=15 // pred_fallthru
          _
        // Predicated region
        $region96: #{image_actor_forward.2} parent=15 // pred_check
          %p483 = pneg %p101
        $region97: #{image_actor_forward.2} parent=15 // pred_check_branch
          %485 = sbr.rel (%p483) target = $region99
        $region98: #{image_actor_forward.2} parent=15 // pred_region
          %p486 = scmp.lt.s32.totalorder %s20, 1
          %s487 = scalar_select %p486, %s20, 1
          %s488 = scalar_lea.vmem %s2, %s487
        $region99: #{image_actor_forward.2} parent=15 // pred_fallthru
          _
        // Predicated region
        $region100: #{image_actor_forward.2} parent=15 // pred_check
          %p489 = pneg %p127
        $region101: #{image_actor_forward.2} parent=15 // pred_check_branch
          %491 = sbr.rel (%p489) target = $region103
        $region102: #{image_actor_forward.2} parent=15 // pred_region
          %p492 = scmp.lt.s32.totalorder %s20, 1
          %s493 = scalar_select %p492, %s20, 1
          %s494 = smul.addr %s493, 16
          %s495 = smul.addr %s494, 4
          %s496 = scalar_lea.vmem %s3, %s495
        $region103: #{image_actor_forward.2} parent=15 // pred_fallthru
          _
        // Predicated region
        $region104: #{image_actor_forward.2} parent=15 // pred_check
          %p497 = pneg %p153
        $region105: #{image_actor_forward.2} parent=15 // pred_check_branch
          %499 = sbr.rel (%p497) target = $region107
        $region106: #{image_actor_forward.2} parent=15 // pred_region
          %p500 = scmp.lt.s32.totalorder %s20, 1
          %s501 = scalar_select %p500, %s20, 1
          %s502 = scalar_lea.vmem %s4, %s501
        $region107: #{image_actor_forward.2} parent=15 // pred_fallthru
          _
        // Predicated region
        $region108: #{image_actor_forward.2} parent=15 // pred_check
          %p503 = pneg %p179
        $region109: #{image_actor_forward.2} parent=15 // pred_check_branch
          %505 = sbr.rel (%p503) target = $region111
        $region110: #{image_actor_forward.2} parent=15 // pred_region
          %p506 = scmp.lt.s32.totalorder %s20, 1
          %s507 = scalar_select %p506, %s20, 1
          %s508 = smul.addr %s507, 16
          %s509 = smul.addr %s508, 4
          %s510 = scalar_lea.vmem %s5, %s509
        $region111: #{image_actor_forward.2} parent=15 // pred_fallthru
          _
        // Predicated region
        $region112: #{image_actor_forward.2} parent=15 // pred_check
          %p511 = pneg %p205
        $region113: #{image_actor_forward.2} parent=15 // pred_check_branch
          %513 = sbr.rel (%p511) target = $region115
        $region114: #{image_actor_forward.2} parent=15 // pred_region
          %p514 = scmp.lt.s32.totalorder %s20, 1
          %s515 = scalar_select %p514, %s20, 1
          %s516 = scalar_lea.vmem %s6, %s515
        $region115: #{image_actor_forward.2} parent=15 // pred_fallthru
          _
      $region16: #{image_actor_forward.2} parent=5 // pred_fallthru
        _
      %p517 = scmp.le.s32.totalorder 1, %s13
      %p518 = scmp.lt.s32.totalorder %s13, 7
      %p519 = pnand %p517, %p518
      %p520 = pneg %p519
      // Predicated region
      $region116: #{image_actor_forward.2} parent=5 // pred_check
        _
      $region117: #{image_actor_forward.2} parent=5 // pred_check_branch
        %522 = sbr.rel (%p519) target = $region119
      $region118: #{image_actor_forward.2} parent=5 // pred_region
        %s523 = ssub.s32 %s13, 1
        %s524 = sand.u32 %s40, 1
        %s525 = sand.u32 %s40, 1
        %s526 = smul.addr %s525, 16
        %s527 = scalar_lea.vmem [#allocation3], %s526
        // Predicated region
        $region120: #{image_actor_forward.2} parent=118 // pred_check
          %p528 = pneg %p53
        $region121: #{image_actor_forward.2} parent=118 // pred_check_branch
          %530 = sbr.rel (%p528) target = $region123
        $region122: #{image_actor_forward.2} parent=118 // pred_region
          _
        $region123: #{image_actor_forward.2} parent=118 // pred_fallthru
          _
        %s531 = sand.u32 %s68, 1
        %s532 = sand.u32 %s68, 1
        %s533 = smul.addr %s532, 128
        %s534 = scalar_lea.vmem [#allocation4], %s533
        // Predicated region
        $region124: #{image_actor_forward.2} parent=118 // pred_check
          %p535 = pneg %p81
        $region125: #{image_actor_forward.2} parent=118 // pred_check_branch
          %537 = sbr.rel (%p535) target = $region127
        $region126: #{image_actor_forward.2} parent=118 // pred_region
          _
        $region127: #{image_actor_forward.2} parent=118 // pred_fallthru
          _
        %s538 = sand.u32 %s40, 1
        %s539 = sand.u32 %s40, 1
        %s540 = smul.addr %s539, 16
        %s541 = scalar_lea.vmem [#allocation3], %s540
        %p542 = pneg %p53
        %p543 = pneg %p50
        %s544 = sand.u32 %s68, 1
        %s545 = sand.u32 %s68, 1
        %s546 = smul.addr %s545, 128
        %s547 = scalar_lea.vmem [#allocation4], %s546
        %p548 = pneg %p81
        %p549 = pneg %p78
        %p550 = scmp.lt.s32.totalorder %s22, 1
        %s551 = scalar_select %p550, %s22, 1
        %s552 = scalar_lea.vmem %s2, %s551
        %p553 = pneg %p107
        %p554 = pneg %p104
        %p555 = scmp.lt.s32.totalorder %s22, 1
        %s556 = scalar_select %p555, %s22, 1
        %s557 = smul.addr %s556, 16
        %s558 = smul.addr %s557, 4
        %s559 = scalar_lea.vmem %s3, %s558
        %p560 = pneg %p133
        %p561 = pneg %p130
        %p562 = scmp.lt.s32.totalorder %s22, 1
        %s563 = scalar_select %p562, %s22, 1
        %s564 = scalar_lea.vmem %s4, %s563
        %p565 = pneg %p159
        %p566 = pneg %p156
        %p567 = scmp.lt.s32.totalorder %s22, 1
        %s568 = scalar_select %p567, %s22, 1
        %s569 = smul.addr %s568, 16
        %s570 = smul.addr %s569, 4
        %s571 = scalar_lea.vmem %s5, %s570
        %p572 = pneg %p185
        %p573 = pneg %p182
        %p574 = scmp.lt.s32.totalorder %s22, 1
        %s575 = scalar_select %p574, %s22, 1
        %s576 = scalar_lea.vmem %s6, %s575
        %p577 = pneg %p211
        %p578 = pneg %p208
        %p579 = pneg %p237
        %p580 = pneg %p234
        %s581 = smul.u32 2, %s22
        %p582 = scmp.lt.s32.totalorder %s581, 3
        %s583 = scalar_select %p582, %s581, 3
        %s584 = smul.addr %s583, 8
        %s585 = scalar_lea.vmem %s7, %s584
        %s586 = smul.u32 2, %s22
        %s587 = smul.u32 2, %s23
        %s588 = smul.u32 32, %s23
        %p589 = scmp.lt.s32.totalorder %s22, 1
        %s590 = scalar_select %p589, %s22, 1
        %s591 = scalar_lea.vmem %s2, %s590
        %p592 = scmp.lt.s32.totalorder %s22, 1
        %s593 = scalar_select %p592, %s22, 1
        %s594 = smul.addr %s593, 16
        %s595 = smul.addr %s594, 4
        %s596 = scalar_lea.vmem %s3, %s595
        %p597 = scmp.lt.s32.totalorder %s22, 1
        %s598 = scalar_select %p597, %s22, 1
        %s599 = scalar_lea.vmem %s4, %s598
        %p600 = scmp.lt.s32.totalorder %s22, 1
        %s601 = scalar_select %p600, %s22, 1
        %s602 = smul.addr %s601, 16
        %s603 = smul.addr %s602, 4
        %s604 = scalar_lea.vmem %s5, %s603
        %p605 = scmp.lt.s32.totalorder %s22, 1
        %s606 = scalar_select %p605, %s22, 1
        %s607 = scalar_lea.vmem %s6, %s606
        %s608 = smul.u32 2, %s22
        %p609 = scmp.lt.s32.totalorder %s608, 3
        %s610 = scalar_select %p609, %s608, 3
        %s611 = smul.addr %s610, 8
        %s612 = scalar_lea.vmem %s7, %s611
        %s613 = smul.u32 2, %s22
        %p615 = scmp.eq.s32.totalorder %s23, 0
        // Predicated region
        $region128: #{image_actor_forward.2} parent=118 // pred_check
          %p616 = pneg %p615
        $region129: #{image_actor_forward.2} parent=118 // pred_check_branch
          %618 = sbr.rel (%p616) target = $region131
        $region130: #{image_actor_forward.2} parent=118 // pred_region
          %v619 = vld [vmem:[%s591] sm:$0x1]
          %v621 = vlaneseq
          %v622 = vshrl.u32 %v621, 7
          %v623 = vsub.s32 0, %v622
          %v624 = vrot.slane %v619, %v623
          %626 = vst [vmem:[#allocation2] sm:$0xff] %v624
          %627 = vst [vmem:[#allocation2 + $0x8] sm:$0xff] %v624
        $region131: #{image_actor_forward.2} parent=118 // pred_fallthru
          _
        %v628 = vld [vmem:[#allocation2] sm:$0xff]
        %v629 = vld [vmem:[#allocation2 + $0x8] sm:$0xff]
        %v630 = vld [vmem:[%s527] sm:$0xff]
        %v631 = vld [vmem:[%s527 + $0x8] sm:$0xff]
        %v632 = vld [vmem:[%s534] sm:$0xf]
        %v633 = vld [vmem:[%s534 + $0x4] sm:$0xf]
        %v634 = vld [vmem:[%s534 + $0x8] sm:$0xf]
        %v635 = vld [vmem:[%s534 + $0xc] sm:$0xf]
        %v636 = vld [vmem:[%s534 + $0x10] sm:$0xf]
        %v637 = vld [vmem:[%s534 + $0x14] sm:$0xf]
        %v638 = vld [vmem:[%s534 + $0x18] sm:$0xf]
        %v639 = vld [vmem:[%s534 + $0x1c] sm:$0xf]
        %v640 = vld [vmem:[%s534 + $0x20] sm:$0xf]
        %v641 = vld [vmem:[%s534 + $0x24] sm:$0xf]
        %v642 = vld [vmem:[%s534 + $0x28] sm:$0xf]
        %v643 = vld [vmem:[%s534 + $0x2c] sm:$0xf]
        %v644 = vld [vmem:[%s534 + $0x30] sm:$0xf]
        %v645 = vld [vmem:[%s534 + $0x34] sm:$0xf]
        %v646 = vld [vmem:[%s534 + $0x38] sm:$0xf]
        %v647 = vld [vmem:[%s534 + $0x3c] sm:$0xf]
        %v648 = vld [vmem:[%s534 + $0x40] sm:$0xf]
        %v649 = vld [vmem:[%s534 + $0x44] sm:$0xf]
        %v650 = vld [vmem:[%s534 + $0x48] sm:$0xf]
        %v651 = vld [vmem:[%s534 + $0x4c] sm:$0xf]
        %v652 = vld [vmem:[%s534 + $0x50] sm:$0xf]
        %v653 = vld [vmem:[%s534 + $0x54] sm:$0xf]
        %v654 = vld [vmem:[%s534 + $0x58] sm:$0xf]
        %v655 = vld [vmem:[%s534 + $0x5c] sm:$0xf]
        %v656 = vld [vmem:[%s534 + $0x60] sm:$0xf]
        %v657 = vld [vmem:[%s534 + $0x64] sm:$0xf]
        %v658 = vld [vmem:[%s534 + $0x68] sm:$0xf]
        %v659 = vld [vmem:[%s534 + $0x6c] sm:$0xf]
        %v660 = vld [vmem:[%s534 + $0x70] sm:$0xf]
        %v661 = vld [vmem:[%s534 + $0x74] sm:$0xf]
        %v662 = vld [vmem:[%s534 + $0x78] sm:$0xf]
        %v663 = vld [vmem:[%s534 + $0x7c] sm:$0xf]
        %v666 = vunpack.c.l.b16 %v630
        %v667 = vunpack.c.h.b16 %v630
        %v668 = vunpack.c.l.b16 %v631
        %v669 = vunpack.c.h.b16 %v631
        %v670 = vpack.c.b16 %v668, %v666
        %v671 = vpack.c.b16 %v669, %v667
        %v706 = vunpack.c.l.b16 %v632
        %v707 = vunpack.c.l.b16 %v633
        %v708 = vunpack.c.l.b16 %v634
        %v709 = vunpack.c.l.b16 %v635
        %v710 = vunpack.c.l.b16 %v636
        %v711 = vunpack.c.l.b16 %v637
        %v712 = vunpack.c.l.b16 %v638
        %v713 = vunpack.c.l.b16 %v639
        %v714 = vunpack.c.l.b16 %v640
        %v715 = vunpack.c.l.b16 %v641
        %v716 = vunpack.c.l.b16 %v642
        %v717 = vunpack.c.l.b16 %v643
        %v718 = vunpack.c.l.b16 %v644
        %v719 = vunpack.c.l.b16 %v645
        %v720 = vunpack.c.l.b16 %v646
        %v721 = vunpack.c.l.b16 %v647
        %v722 = vunpack.c.l.b16 %v648
        %v723 = vunpack.c.l.b16 %v649
        %v724 = vunpack.c.l.b16 %v650
        %v725 = vunpack.c.l.b16 %v651
        %v726 = vunpack.c.l.b16 %v652
        %v727 = vunpack.c.l.b16 %v653
        %v728 = vunpack.c.l.b16 %v654
        %v729 = vunpack.c.l.b16 %v655
        %v730 = vunpack.c.l.b16 %v656
        %v731 = vunpack.c.l.b16 %v657
        %v732 = vunpack.c.l.b16 %v658
        %v733 = vunpack.c.l.b16 %v659
        %v734 = vunpack.c.l.b16 %v660
        %v735 = vunpack.c.l.b16 %v661
        %v736 = vunpack.c.l.b16 %v662
        %v737 = vunpack.c.l.b16 %v663
        %v738 = vpack.c.b16 %v707, %v706
        %v739 = vpack.c.b16 %v709, %v708
        %v740 = vpack.c.b16 %v711, %v710
        %v741 = vpack.c.b16 %v713, %v712
        %v742 = vpack.c.b16 %v715, %v714
        %v743 = vpack.c.b16 %v717, %v716
        %v744 = vpack.c.b16 %v719, %v718
        %v745 = vpack.c.b16 %v721, %v720
        %v746 = vpack.c.b16 %v723, %v722
        %v747 = vpack.c.b16 %v725, %v724
        %v748 = vpack.c.b16 %v727, %v726
        %v749 = vpack.c.b16 %v729, %v728
        %v750 = vpack.c.b16 %v731, %v730
        %v751 = vpack.c.b16 %v733, %v732
        %v752 = vpack.c.b16 %v735, %v734
        %v753 = vpack.c.b16 %v737, %v736
        %770 = vmatprep.subr.bf16.mxu0 0
        %771 = vmatpush1.bf16.msra.mxu0 %v745
        %772 = vmatprep.subr.bf16.mxu0 0
        %773 = vmatpush1.bf16.msra.mxu0 %v744
        %774 = vmatprep.subr.bf16.mxu0 0
        %775 = vmatpush1.bf16.msra.mxu0 %v743
        %776 = vmatprep.subr.bf16.mxu0 0
        %777 = vmatpush1.bf16.msra.mxu0 %v742
        %778 = vmatprep.subr.bf16.mxu0 0
        %779 = vmatpush1.bf16.msra.mxu0 %v741
        %780 = vmatprep.subr.bf16.mxu0 0
        %781 = vmatpush1.bf16.msra.mxu0 %v740
        %782 = vmatprep.subr.bf16.mxu0 0
        %783 = vmatpush1.bf16.msra.mxu0 %v739
        %784 = vmatprep.subr.bf16.mxu0 0
        %785 = vmatpush1.bf16.msra.mxu0 %v738
        %786 = vmatprep.subr.bf16.mxu0 0
        %787 = vmatpush2.bf16.msra.mxu0 %v753
        %788 = vmatprep.subr.bf16.mxu0 0
        %789 = vmatpush2.bf16.msra.mxu0 %v752
        %790 = vmatprep.subr.bf16.mxu0 0
        %791 = vmatpush2.bf16.msra.mxu0 %v751
        %792 = vmatprep.subr.bf16.mxu0 0
        %793 = vmatpush2.bf16.msra.mxu0 %v750
        %794 = vmatprep.subr.bf16.mxu0 0
        %795 = vmatpush2.bf16.msra.mxu0 %v749
        %796 = vmatprep.subr.bf16.mxu0 0
        %797 = vmatpush2.bf16.msra.mxu0 %v748
        %798 = vmatprep.subr.bf16.mxu0 0
        %799 = vmatpush2.bf16.msra.mxu0 %v747
        %800 = vmatprep.subr.bf16.mxu0 0
        %801 = vmatpush2.bf16.msra.mxu0 %v746
        %802 = vmatprep.mubr.bf16.mxu0 %v671
        %803 = vmatmul.mubr.bf16.gmra.mxu0 %v670
        %v804 = vpop.f32.mrf.mxu0
        %v805 = vadd.f32 0.0, %v804
        %v806 = vpop.f32.mrf.mxu0
        %v807 = vpop.f32.mrf.mxu0
        %v808 = vadd.f32 0.0, %v807
        %v809 = vpop.f32.mrf.mxu0
        %810 = vdwg.mxu0
        %v811 = vadd.f32 %v628, %v805
        %v812 = vadd.f32 %v629, %v808
        %813 = vst [vmem:[#allocation2] sm:$0xff] %v811
        %814 = vst [vmem:[#allocation2 + $0x8] sm:$0xff] %v812
        %p815 = scmp.eq.s32.totalorder %s23, 2
        // Predicated region
        $region132: #{image_actor_forward.2} parent=118 // pred_check
          %p816 = pneg %p815
        $region133: #{image_actor_forward.2} parent=118 // pred_check_branch
          %818 = sbr.rel (%p816) target = $region135
        $region134: #{image_actor_forward.2} parent=118 // pred_region
          %v819 = vld [vmem:[#allocation2] sm:$0xff]
          %v820 = vld [vmem:[#allocation2 + $0x8] sm:$0xff]
          %v821 = vmax.f32 %v819, 0.0
          %v822 = vmax.f32 %v820, 0.0
          %v823 = vpack.c.bf16 %v822, %v821
          %v824 = vld [vmem:[%s596] sm:$0xf]
          %v825 = vld [vmem:[%s596 + $0x4] sm:$0xf]
          %v826 = vld [vmem:[%s596 + $0x8] sm:$0xf]
          %v827 = vld [vmem:[%s596 + $0xc] sm:$0xf]
          %v828 = vld [vmem:[%s596 + $0x10] sm:$0xf]
          %v829 = vld [vmem:[%s596 + $0x14] sm:$0xf]
          %v830 = vld [vmem:[%s596 + $0x18] sm:$0xf]
          %v831 = vld [vmem:[%s596 + $0x1c] sm:$0xf]
          %v832 = vld [vmem:[%s596 + $0x20] sm:$0xf]
          %v833 = vld [vmem:[%s596 + $0x24] sm:$0xf]
          %v834 = vld [vmem:[%s596 + $0x28] sm:$0xf]
          %v835 = vld [vmem:[%s596 + $0x2c] sm:$0xf]
          %v836 = vld [vmem:[%s596 + $0x30] sm:$0xf]
          %v837 = vld [vmem:[%s596 + $0x34] sm:$0xf]
          %v838 = vld [vmem:[%s596 + $0x38] sm:$0xf]
          %v839 = vld [vmem:[%s596 + $0x3c] sm:$0xf]
          %v840 = vld [vmem:[%s599] sm:$0x1]
          %v842 = vlaneseq
          %v843 = vshrl.u32 %v842, 7
          %v844 = vsub.s32 0, %v843
          %v845 = vrot.slane %v840, %v844
          %v863 = vunpack.c.l.b16 %v824
          %v864 = vunpack.c.l.b16 %v825
          %v865 = vunpack.c.l.b16 %v826
          %v866 = vunpack.c.l.b16 %v827
          %v867 = vunpack.c.l.b16 %v828
          %v868 = vunpack.c.l.b16 %v829
          %v869 = vunpack.c.l.b16 %v830
          %v870 = vunpack.c.l.b16 %v831
          %v871 = vunpack.c.l.b16 %v832
          %v872 = vunpack.c.l.b16 %v833
          %v873 = vunpack.c.l.b16 %v834
          %v874 = vunpack.c.l.b16 %v835
          %v875 = vunpack.c.l.b16 %v836
          %v876 = vunpack.c.l.b16 %v837
          %v877 = vunpack.c.l.b16 %v838
          %v878 = vunpack.c.l.b16 %v839
          %v879 = vpack.c.b16 %v864, %v863
          %v880 = vpack.c.b16 %v866, %v865
          %v881 = vpack.c.b16 %v868, %v867
          %v882 = vpack.c.b16 %v870, %v869
          %v883 = vpack.c.b16 %v872, %v871
          %v884 = vpack.c.b16 %v874, %v873
          %v885 = vpack.c.b16 %v876, %v875
          %v886 = vpack.c.b16 %v878, %v877
          %895 = vmatprep.subr.bf16.mxu0 0
          %896 = vmatpush1.bf16.msra.mxu0 %v886
          %897 = vmatprep.subr.bf16.mxu0 0
          %898 = vmatpush1.bf16.msra.mxu0 %v885
          %899 = vmatprep.subr.bf16.mxu0 0
          %900 = vmatpush1.bf16.msra.mxu0 %v884
          %901 = vmatprep.subr.bf16.mxu0 0
          %902 = vmatpush1.bf16.msra.mxu0 %v883
          %903 = vmatprep.subr.bf16.mxu0 0
          %904 = vmatpush1.bf16.msra.mxu0 %v882
          %905 = vmatprep.subr.bf16.mxu0 0
          %906 = vmatpush1.bf16.msra.mxu0 %v881
          %907 = vmatprep.subr.bf16.mxu0 0
          %908 = vmatpush1.bf16.msra.mxu0 %v880
          %909 = vmatprep.subr.bf16.mxu0 0
          %910 = vmatpush1.bf16.msra.mxu0 %v879
          %911 = vmatprep.subr.bf16.mxu0 0
          %912 = vmatpush2.bf16.msra.mxu0 0
          %913 = vmatprep.subr.bf16.mxu0 0
          %914 = vmatpush2.bf16.msra.mxu0 0
          %915 = vmatprep.subr.bf16.mxu0 0
          %916 = vmatpush2.bf16.msra.mxu0 0
          %917 = vmatprep.subr.bf16.mxu0 0
          %918 = vmatpush2.bf16.msra.mxu0 0
          %919 = vmatprep.subr.bf16.mxu0 0
          %920 = vmatpush2.bf16.msra.mxu0 0
          %921 = vmatprep.subr.bf16.mxu0 0
          %922 = vmatpush2.bf16.msra.mxu0 0
          %923 = vmatprep.subr.bf16.mxu0 0
          %924 = vmatpush2.bf16.msra.mxu0 0
          %925 = vmatprep.subr.bf16.mxu0 0
          %926 = vmatpush2.bf16.msra.mxu0 0
          %927 = vmatprep.mubr.bf16.mxu0 0
          %928 = vmatmul.mubr.bf16.gmra.mxu0 %v823
          %v929 = vpop.f32.mrf.mxu0
          %v930 = vadd.f32 %v845, %v929
          %v931 = vpop.f32.mrf.mxu0
          %v932 = vpop.f32.mrf.mxu0
          %v933 = vadd.f32 %v845, %v932
          %v934 = vpop.f32.mrf.mxu0
          %935 = vdwg.mxu0
          %v936 = vmax.f32 %v930, 0.0
          %v937 = vmax.f32 %v933, 0.0
          %v938 = vpack.c.bf16 %v937, %v936
          %v939 = vld [vmem:[%s604] sm:$0xf]
          %v940 = vld [vmem:[%s604 + $0x4] sm:$0xf]
          %v941 = vld [vmem:[%s604 + $0x8] sm:$0xf]
          %v942 = vld [vmem:[%s604 + $0xc] sm:$0xf]
          %v943 = vld [vmem:[%s604 + $0x10] sm:$0xf]
          %v944 = vld [vmem:[%s604 + $0x14] sm:$0xf]
          %v945 = vld [vmem:[%s604 + $0x18] sm:$0xf]
          %v946 = vld [vmem:[%s604 + $0x1c] sm:$0xf]
          %v947 = vld [vmem:[%s604 + $0x20] sm:$0xf]
          %v948 = vld [vmem:[%s604 + $0x24] sm:$0xf]
          %v949 = vld [vmem:[%s604 + $0x28] sm:$0xf]
          %v950 = vld [vmem:[%s604 + $0x2c] sm:$0xf]
          %v951 = vld [vmem:[%s604 + $0x30] sm:$0xf]
          %v952 = vld [vmem:[%s604 + $0x34] sm:$0xf]
          %v953 = vld [vmem:[%s604 + $0x38] sm:$0xf]
          %v954 = vld [vmem:[%s604 + $0x3c] sm:$0xf]
          %v955 = vld [vmem:[%s607] sm:$0x1]
          %v957 = vlaneseq
          %v958 = vshrl.u32 %v957, 7
          %v959 = vsub.s32 0, %v958
          %v960 = vrot.slane %v955, %v959
          %v978 = vunpack.c.l.b16 %v939
          %v979 = vunpack.c.l.b16 %v940
          %v980 = vunpack.c.l.b16 %v941
          %v981 = vunpack.c.l.b16 %v942
          %v982 = vunpack.c.l.b16 %v943
          %v983 = vunpack.c.l.b16 %v944
          %v984 = vunpack.c.l.b16 %v945
          %v985 = vunpack.c.l.b16 %v946
          %v986 = vunpack.c.l.b16 %v947
          %v987 = vunpack.c.l.b16 %v948
          %v988 = vunpack.c.l.b16 %v949
          %v989 = vunpack.c.l.b16 %v950
          %v990 = vunpack.c.l.b16 %v951
          %v991 = vunpack.c.l.b16 %v952
          %v992 = vunpack.c.l.b16 %v953
          %v993 = vunpack.c.l.b16 %v954
          %v994 = vpack.c.b16 %v979, %v978
          %v995 = vpack.c.b16 %v981, %v980
          %v996 = vpack.c.b16 %v983, %v982
          %v997 = vpack.c.b16 %v985, %v984
          %v998 = vpack.c.b16 %v987, %v986
          %v999 = vpack.c.b16 %v989, %v988
          %v1000 = vpack.c.b16 %v991, %v990
          %v1001 = vpack.c.b16 %v993, %v992
          %1010 = vmatprep.subr.bf16.mxu0 0
          %1011 = vmatpush1.bf16.msra.mxu0 %v1001
          %1012 = vmatprep.subr.bf16.mxu0 0
          %1013 = vmatpush1.bf16.msra.mxu0 %v1000
          %1014 = vmatprep.subr.bf16.mxu0 0
          %1015 = vmatpush1.bf16.msra.mxu0 %v999
          %1016 = vmatprep.subr.bf16.mxu0 0
          %1017 = vmatpush1.bf16.msra.mxu0 %v998
          %1018 = vmatprep.subr.bf16.mxu0 0
          %1019 = vmatpush1.bf16.msra.mxu0 %v997
          %1020 = vmatprep.subr.bf16.mxu0 0
          %1021 = vmatpush1.bf16.msra.mxu0 %v996
          %1022 = vmatprep.subr.bf16.mxu0 0
          %1023 = vmatpush1.bf16.msra.mxu0 %v995
          %1024 = vmatprep.subr.bf16.mxu0 0
          %1025 = vmatpush1.bf16.msra.mxu0 %v994
          %1026 = vmatprep.subr.bf16.mxu0 0
          %1027 = vmatpush2.bf16.msra.mxu0 0
          %1028 = vmatprep.subr.bf16.mxu0 0
          %1029 = vmatpush2.bf16.msra.mxu0 0
          %1030 = vmatprep.subr.bf16.mxu0 0
          %1031 = vmatpush2.bf16.msra.mxu0 0
          %1032 = vmatprep.subr.bf16.mxu0 0
          %1033 = vmatpush2.bf16.msra.mxu0 0
          %1034 = vmatprep.subr.bf16.mxu0 0
          %1035 = vmatpush2.bf16.msra.mxu0 0
          %1036 = vmatprep.subr.bf16.mxu0 0
          %1037 = vmatpush2.bf16.msra.mxu0 0
          %1038 = vmatprep.subr.bf16.mxu0 0
          %1039 = vmatpush2.bf16.msra.mxu0 0
          %1040 = vmatprep.subr.bf16.mxu0 0
          %1041 = vmatpush2.bf16.msra.mxu0 0
          %1042 = vmatprep.mubr.bf16.mxu0 0
          %1043 = vmatmul.mubr.bf16.gmra.mxu0 %v938
          %v1044 = vpop.f32.mrf.mxu0
          %v1045 = vadd.f32 %v960, %v1044
          %v1046 = vpop.f32.mrf.mxu0
          %v1047 = vpop.f32.mrf.mxu0
          %v1048 = vadd.f32 %v960, %v1047
          %v1049 = vpop.f32.mrf.mxu0
          %1050 = vdwg.mxu0
          %v1051 = vmax.f32 %v1045, 0.0
          %v1052 = vmax.f32 %v1048, 0.0
          %1053 = vst [vmem:[%s612] sm:$0xff] %v1051
          %1054 = vst [vmem:[%s612 + $0x8] sm:$0xff] %v1052
        $region135: #{image_actor_forward.2} parent=118 // pred_fallthru
          _
        %s1055 = smul.u32 2, %s22
        %p1056 = scmp.lt.s32.totalorder %s1055, 3
        %s1057 = scalar_select %p1056, %s1055, 3
        %s1058 = smul.addr %s1057, 8
        %s1059 = scalar_lea.vmem %s7, %s1058
        // Predicated region
        $region136: #{image_actor_forward.2} parent=118 // pred_check
          %p1060 = pneg %p234
        $region137: #{image_actor_forward.2} parent=118 // pred_check_branch
          %1062 = sbr.rel (%p1060) target = $region139
        $region138: #{image_actor_forward.2} parent=118 // pred_region
          %s1063 = smul.u32 2, %s22
        $region139: #{image_actor_forward.2} parent=118 // pred_fallthru
          _
      $region119: #{image_actor_forward.2} parent=5 // pred_fallthru
        _
      %p1064 = scmp.le.s32.totalorder 2, %s13
      // Predicated region
      $region140: #{image_actor_forward.2} parent=5 // pred_check
        %p1065 = pneg %p1064
      $region141: #{image_actor_forward.2} parent=5 // pred_check_branch
        %1067 = sbr.rel (%p1065) target = $region143
      $region142: #{image_actor_forward.2} parent=5 // pred_region
        %s1068 = ssub.s32 %s13, 2
        // Predicated region
        $region144: #{image_actor_forward.2} parent=142 // pred_check
          %p1069 = pneg %p240
        $region145: #{image_actor_forward.2} parent=142 // pred_check_branch
          %1071 = sbr.rel (%p1069) target = $region147
        $region146: #{image_actor_forward.2} parent=142 // pred_region
          %s1072 = smul.u32 2, %s24
          %p1073 = scmp.lt.s32.totalorder %s1072, 3
          %s1074 = scalar_select %p1073, %s1072, 3
          %s1075 = smul.addr %s1074, 8
          %s1076 = scalar_lea.vmem %s7, %s1075
        $region147: #{image_actor_forward.2} parent=142 // pred_fallthru
          _
      $region143: #{image_actor_forward.2} parent=5 // pred_fallthru
        _
    $region6: #{image_actor_forward.2} parent=1 // loop_footer
      %s17 = sadd.s32 1, %s13
    $region7: #{image_actor_forward.2} parent=1 // loop_footer_branch
      %12 = sbr.rel target = $region3
    $region8: #{image_actor_forward.2} parent=1 // loop_exit
      _

</llo_original>
